<compile_context>
chip_gen: v7x
topology: tpu7x:2x2x1
jax: 0.10.0
libtpu: 0.0.40
codegen_flags: <defaults>
</compile_context>

<pallas_src>
import jax
import jax.numpy as jnp
from jax import lax
from jax.experimental import pallas as pl
from jax.experimental.pallas import tpu as pltpu

# ----------------------------------------------------------------------------
# Synthetic "config" (mirrors the fields the PyTorch module reads)
# ----------------------------------------------------------------------------
VOCAB = 128         # token vocabulary (lane-dense)
SEQ_LEN = 8         # tokens per node
EMB_DIM = 128       # textLayer embedding / output dim (lane-dense)
HID_DIM = 128       # GAT output dim (lane-dense)
N_NODES = 8         # graph size
N_REL = 6           # relation count (mask_adj concatenates 6 copies)
MASK_RATE = 0.3     # config.TRAIN.mask_rate
MASK_TOKEN = 0      # config.DATA.maskfortext
PRETRAIN = True     # config.TRAIN.pretrain

_NEG_INF = -1e30


def _vmem():
    return pl.BlockSpec(memory_space=pltpu.MemorySpace.VMEM)


# ----------------------------------------------------------------------------
# In-kernel helpers (traced inside Pallas kernel bodies)
# ----------------------------------------------------------------------------
def _token_counts(tok_ref):
    """(N, L) int32 tokens -> ((N, V) f32 token-count matrix, (N, V) vocab iota)."""
    n, l = tok_ref.shape
    vocab_iota = lax.broadcasted_iota(jnp.int32, (n, VOCAB), 1)
    counts = jnp.zeros((n, VOCAB), jnp.float32)
    for j in range(l):                                     # L small & static -> unrolled
        counts = counts + (tok_ref[:, j:j + 1] == vocab_iota).astype(jnp.float32)
    return counts, vocab_iota


def _text_embed(counts, w_comb_bf16, b):
    """textLayer: mean-pool + linear + tanh, folded into a single MXU matmul:
    tanh((counts / L) @ (emb @ w_txt) + b)."""
    pooled = (counts * (1.0 / SEQ_LEN)).astype(jnp.bfloat16)
    return jnp.tanh(jnp.dot(pooled, w_comb_bf16,
                            preferred_element_type=jnp.float32) + b)


def _union_and_eye(adj_ref):
    """(R, N, N) adjacency -> ((N, N) union-of-relations mask, (N, N) identity)."""
    n = adj_ref.shape[1]
    e_mx = adj_ref[0]
    for r in range(1, adj_ref.shape[0]):                   # R static -> unrolled adds
        e_mx = e_mx + adj_ref[r]
    union = (e_mx > 0).astype(jnp.float32)
    eye = (lax.broadcasted_iota(jnp.int32, (n, n), 0) ==
           lax.broadcasted_iota(jnp.int32, (n, n), 1)).astype(jnp.float32)
    return union, eye


def _gat(h, mask, w_gat_bf16, a_src, a_dst):
    """Single-head GAT: W h, LeakyReLU attention, masked row-softmax, ELU."""
    hp = jnp.dot(h.astype(jnp.bfloat16), w_gat_bf16,
                 preferred_element_type=jnp.float32)                        # (N, H)
    # attention logits without any skinny-tensor transpose:
    s_src = lax.dot_general(hp, a_src, (((1,), (1,)), ((), ())),
                            preferred_element_type=jnp.float32)             # (N, 1)
    s_dst = lax.dot_general(a_dst, hp, (((1,), (1,)), ((), ())),
                            preferred_element_type=jnp.float32)             # (1, N)
    e = s_src + s_dst                                                       # (N, N)
    e = jnp.where(e > 0, e, 0.2 * e)                                        # LeakyReLU(0.2)
    e = jnp.where(mask > 0, e, _NEG_INF)                                    # mask non-edges
    e = e - jnp.max(e, axis=-1, keepdims=True)
    p = jnp.exp(e)
    alpha = p * pl.reciprocal(jnp.sum(p, axis=-1, keepdims=True), approx=True)
    out = jnp.dot(alpha.astype(jnp.bfloat16), hp.astype(jnp.bfloat16),
                  preferred_element_type=jnp.float32)
    return jnp.where(out > 0, out, jnp.exp(jnp.minimum(out, 0.0)) - 1.0)    # ELU


# ----------------------------------------------------------------------------
# Pallas kernels
# ----------------------------------------------------------------------------
def _pretrain_kernel(tok_ref, rep_ref, mcol_ref, mrow_ref, adj_ref,
                     emb_ref, w_txt_ref, b_txt_ref,
                     w_gat_ref, a_src_ref, a_dst_ref,
                     logsm_ref, lbl_ref):
    n = tok_ref.shape[0]

    # ---- textLayer for clean and MLM-masked tokens -------------------------
    counts, vocab_iota = _token_counts(tok_ref)
    mask_counts = float(SEQ_LEN) * (vocab_iota == MASK_TOKEN).astype(jnp.float32)
    counts_m = jnp.where(rep_ref[...] > 0, mask_counts, counts)    # ntext: whole row -> MASK_TOKEN

    w_comb = jnp.dot(emb_ref[...].astype(jnp.bfloat16),            # emb @ w_txt, shared by both passes
                     w_txt_ref[...].astype(jnp.bfloat16),
                     preferred_element_type=jnp.float32).astype(jnp.bfloat16)
    b = b_txt_ref[...]
    text_emb = _text_embed(counts, w_comb, b)
    # TODO(synk): wrap in lax.stop_gradient to match .detach() if ever differentiated.
    text_emb_m = _text_embed(counts_m, w_comb, b)

    # ---- adjacency union masks (computed once, no (6,N,N) re-materialisation)
    union, eye = _union_and_eye(adj_ref)
    adj_mask = jnp.maximum(union, eye)                             # original adjacency + self loops
    madj = jnp.maximum(mcol_ref[...], mrow_ref[...]) * union       # == where(e_mx + madj > 1, madj, 0)
    adj_mask_m = jnp.maximum(madj, eye)                            # union over the 6 identical copies

    # ---- single-head GAT (shared weights), clean + masked pass -------------
    w_gat = w_gat_ref[...].astype(jnp.bfloat16)
    a_src = a_src_ref[...]
    a_dst = a_dst_ref[...]
    g = _gat(text_emb, adj_mask, w_gat, a_src, a_dst)
    g_m = _gat(text_emb_m, adj_mask_m, w_gat, a_src, a_dst)

    # ---- LogSoftmax(G @ G_mask^T, dim=1) ------------------------------------
    s = lax.dot_general(g.astype(jnp.bfloat16), g_m.astype(jnp.bfloat16),
                        (((1,), (1,)), ((), ())),
                        preferred_element_type=jnp.float32)        # (N, N)
    z = s - jnp.max(s, axis=1, keepdims=True)
    lse = jnp.log(jnp.sum(jnp.exp(z), axis=1, keepdims=True))
    logsm = z - lse
    logsm_ref[...] = logsm

    # ---- fused argmax(dim=0) epilogue (label_mask) --------------------------
    col_max = jnp.max(logsm, axis=0, keepdims=True)                # (1, N)
    row_ids = lax.broadcasted_iota(jnp.int32, (n, n), 0)
    lbl_ref[...] = jnp.min(jnp.where(logsm >= col_max, row_ids, n),
                           axis=0, keepdims=True).astype(jnp.int32)


def _embed_kernel(tok_ref, adj_ref, emb_ref, w_txt_ref, b_txt_ref,
                  w_gat_ref, a_src_ref, a_dst_ref, g_ref):
    # Non-pretrain path: textLayer -> GAT only.
    counts, _ = _token_counts(tok_ref)
    w_comb = jnp.dot(emb_ref[...].astype(jnp.bfloat16),
                     w_txt_ref[...].astype(jnp.bfloat16),
                     preferred_element_type=jnp.float32).astype(jnp.bfloat16)
    text_emb = _text_embed(counts, w_comb, b_txt_ref[...])
    union, eye = _union_and_eye(adj_ref)
    g_ref[...] = _gat(text_emb, jnp.maximum(union, eye),
                      w_gat_ref[...].astype(jnp.bfloat16),
                      a_src_ref[...], a_dst_ref[...])


# ----------------------------------------------------------------------------
# Forward (thin JAX wrapper: RNG + a single fused pallas_call)
# ----------------------------------------------------------------------------
def forward(params, tokens, types, adj, key):
    n = tokens.shape[0]
    label = jnp.arange(n, dtype=jnp.int32)

    if not PRETRAIN:
        return pl.pallas_call(
            _embed_kernel,
            out_shape=jax.ShapeDtypeStruct((n, HID_DIM), jnp.float32),
            in_specs=[_vmem()] * 8,
            out_specs=_vmem(),
        )(tokens, adj, params["emb"], params["w_txt"], params["b_txt"],
          params["w_gat"], params["a_src"], params["a_dst"])

    # MLM node-level masking (torch.bernoulli -> deterministic jax.random).
    k1, k2 = jax.random.split(key)
    masked = jax.random.bernoulli(k1, MASK_RATE, (n,))
    _mask_label = jnp.where(masked, label, -1)            # kept for fidelity; unused downstream
    replaced = jax.random.bernoulli(k2, 0.8, (n,)) & masked
    ntype = jnp.where(replaced, -1, types)

    rep_col = replaced.astype(jnp.float32).reshape(n, 1)  # ntext masking flag (per node)
    m = (ntype == -1).astype(jnp.float32)                 # mask_adj keys on ntype == -1
    m_col = m.reshape(n, 1)
    m_row = m.reshape(1, n)

    logsm, lbl = pl.pallas_call(
        _pretrain_kernel,
        out_shape=(jax.ShapeDtypeStruct((n, n), jnp.float32),
                   jax.ShapeDtypeStruct((1, n), jnp.int32)),
        in_specs=[_vmem()] * 11,
        out_specs=(_vmem(), _vmem()),
    )(tokens, rep_col, m_col, m_row, adj,
      params["emb"], params["w_txt"], params["b_txt"],
      params["w_gat"], params["a_src"], params["a_dst"])

    label_mask = lbl[0]
    assert label.shape == label_mask.shape                # size check from the original module
    return [label, logsm]


def init_params(key):
    ks = jax.random.split(key, 5)
    s = 0.1
    return {
        "emb":   s * jax.random.normal(ks[0], (VOCAB, EMB_DIM), jnp.float32),
        "w_txt": s * jax.random.normal(ks[1], (EMB_DIM, EMB_DIM), jnp.float32),
        "b_txt": jnp.zeros((1, EMB_DIM), jnp.float32),
        "w_gat": s * jax.random.normal(ks[2], (EMB_DIM, HID_DIM), jnp.float32),
        "a_src": s * jax.random.normal(ks[3], (1, HID_DIM), jnp.float32),
        "a_dst": s * jax.random.normal(ks[4], (1, HID_DIM), jnp.float32),
    }


if __name__ == "__main__":
    key = jax.random.PRNGKey(0)
    kp, kt, ky, ka, km = jax.random.split(key, 5)
    params = init_params(kp)

    tokens = jax.random.randint(kt, (N_NODES, SEQ_LEN), 1, VOCAB, dtype=jnp.int32)
    types = jax.random.randint(ky, (N_NODES,), 0, 4, dtype=jnp.int32)
    adj = jax.random.bernoulli(ka, 0.4, (N_REL, N_NODES, N_NODES)).astype(jnp.float32)

    fwd = jax.jit(forward)
    label, logsm = fwd(params, tokens, types, adj, km)
    jax.block_until_ready(logsm)
    jax.block_until_ready(label)
    print("KERNEL_OK")
</pallas_src>

<mosaic_0001>
module attributes {stable_mosaic.version = 11 : i64} {
  func.func @_pretrain_kernel(%arg0: memref<8x8xi32, #tpu.memory_space<vmem>>, %arg1: memref<8x1xf32, #tpu.memory_space<vmem>>, %arg2: memref<8x1xf32, #tpu.memory_space<vmem>>, %arg3: memref<1x8xf32, #tpu.memory_space<vmem>>, %arg4: memref<6x8x8xf32, #tpu.memory_space<vmem>>, %arg5: memref<128x128xf32, #tpu.memory_space<vmem>>, %arg6: memref<128x128xf32, #tpu.memory_space<vmem>>, %arg7: memref<1x128xf32, #tpu.memory_space<vmem>>, %arg8: memref<128x128xf32, #tpu.memory_space<vmem>>, %arg9: memref<1x128xf32, #tpu.memory_space<vmem>>, %arg10: memref<1x128xf32, #tpu.memory_space<vmem>>, %arg11: memref<8x8xf32, #tpu.memory_space<vmem>>, %arg12: memref<1x8xi32, #tpu.memory_space<vmem>>) attributes {dimension_semantics = [], scalar_prefetch = 0 : i64, scratch_operands = 0 : i64, tpu.core_type = #tpu.core_type<tc>} {
    %0 = tpu.iota {dimensions = array<i32: 1>} : vector<8x128xi32>
    %cst = arith.constant 0.000000e+00 : f32
    %1 = vector.broadcast %cst : f32 to vector<8x128xf32>
    %c0 = arith.constant 0 : index
    %c0_0 = arith.constant 0 : index
    %2 = vector.load %arg0[%c0, %c0_0] : memref<8x8xi32, #tpu.memory_space<vmem>>, vector<8x1xi32>
    %3 = vector.broadcast %2 : vector<8x1xi32> to vector<8x128xi32>
    %4 = arith.cmpi eq, %3, %0 : vector<8x128xi32>
    %5 = arith.extui %4 : vector<8x128xi1> to vector<8x128xi32>
    %6 = arith.sitofp %5 : vector<8x128xi32> to vector<8x128xf32>
    %7 = arith.addf %1, %6 : vector<8x128xf32>
    %c0_1 = arith.constant 0 : index
    %c1 = arith.constant 1 : index
    %8 = vector.load %arg0[%c0_1, %c1] : memref<8x8xi32, #tpu.memory_space<vmem>>, vector<8x1xi32>
    %9 = vector.broadcast %8 : vector<8x1xi32> to vector<8x128xi32>
    %10 = arith.cmpi eq, %9, %0 : vector<8x128xi32>
    %11 = arith.extui %10 : vector<8x128xi1> to vector<8x128xi32>
    %12 = arith.sitofp %11 : vector<8x128xi32> to vector<8x128xf32>
    %13 = arith.addf %7, %12 : vector<8x128xf32>
    %c0_2 = arith.constant 0 : index
    %c2 = arith.constant 2 : index
    %14 = vector.load %arg0[%c0_2, %c2] : memref<8x8xi32, #tpu.memory_space<vmem>>, vector<8x1xi32>
    %15 = vector.broadcast %14 : vector<8x1xi32> to vector<8x128xi32>
    %16 = arith.cmpi eq, %15, %0 : vector<8x128xi32>
    %17 = arith.extui %16 : vector<8x128xi1> to vector<8x128xi32>
    %18 = arith.sitofp %17 : vector<8x128xi32> to vector<8x128xf32>
    %19 = arith.addf %13, %18 : vector<8x128xf32>
    %c0_3 = arith.constant 0 : index
    %c3 = arith.constant 3 : index
    %20 = vector.load %arg0[%c0_3, %c3] : memref<8x8xi32, #tpu.memory_space<vmem>>, vector<8x1xi32>
    %21 = vector.broadcast %20 : vector<8x1xi32> to vector<8x128xi32>
    %22 = arith.cmpi eq, %21, %0 : vector<8x128xi32>
    %23 = arith.extui %22 : vector<8x128xi1> to vector<8x128xi32>
    %24 = arith.sitofp %23 : vector<8x128xi32> to vector<8x128xf32>
    %25 = arith.addf %19, %24 : vector<8x128xf32>
    %c0_4 = arith.constant 0 : index
    %c4 = arith.constant 4 : index
    %26 = vector.load %arg0[%c0_4, %c4] : memref<8x8xi32, #tpu.memory_space<vmem>>, vector<8x1xi32>
    %27 = vector.broadcast %26 : vector<8x1xi32> to vector<8x128xi32>
    %28 = arith.cmpi eq, %27, %0 : vector<8x128xi32>
    %29 = arith.extui %28 : vector<8x128xi1> to vector<8x128xi32>
    %30 = arith.sitofp %29 : vector<8x128xi32> to vector<8x128xf32>
    %31 = arith.addf %25, %30 : vector<8x128xf32>
    %c0_5 = arith.constant 0 : index
    %c5 = arith.constant 5 : index
    %32 = vector.load %arg0[%c0_5, %c5] : memref<8x8xi32, #tpu.memory_space<vmem>>, vector<8x1xi32>
    %33 = vector.broadcast %32 : vector<8x1xi32> to vector<8x128xi32>
    %34 = arith.cmpi eq, %33, %0 : vector<8x128xi32>
    %35 = arith.extui %34 : vector<8x128xi1> to vector<8x128xi32>
    %36 = arith.sitofp %35 : vector<8x128xi32> to vector<8x128xf32>
    %37 = arith.addf %31, %36 : vector<8x128xf32>
    %c0_6 = arith.constant 0 : index
    %c6 = arith.constant 6 : index
    %38 = vector.load %arg0[%c0_6, %c6] : memref<8x8xi32, #tpu.memory_space<vmem>>, vector<8x1xi32>
    %39 = vector.broadcast %38 : vector<8x1xi32> to vector<8x128xi32>
    %40 = arith.cmpi eq, %39, %0 : vector<8x128xi32>
    %41 = arith.extui %40 : vector<8x128xi1> to vector<8x128xi32>
    %42 = arith.sitofp %41 : vector<8x128xi32> to vector<8x128xf32>
    %43 = arith.addf %37, %42 : vector<8x128xf32>
    %c0_7 = arith.constant 0 : index
    %c7 = arith.constant 7 : index
    %44 = vector.load %arg0[%c0_7, %c7] : memref<8x8xi32, #tpu.memory_space<vmem>>, vector<8x1xi32>
    %45 = vector.broadcast %44 : vector<8x1xi32> to vector<8x128xi32>
    %46 = arith.cmpi eq, %45, %0 : vector<8x128xi32>
    %47 = arith.extui %46 : vector<8x128xi1> to vector<8x128xi32>
    %48 = arith.sitofp %47 : vector<8x128xi32> to vector<8x128xf32>
    %49 = arith.addf %43, %48 : vector<8x128xf32>
    %c0_i32 = arith.constant 0 : i32
    %50 = vector.broadcast %c0_i32 : i32 to vector<8x128xi32>
    %51 = arith.cmpi eq, %0, %50 : vector<8x128xi32>
    %52 = arith.extui %51 : vector<8x128xi1> to vector<8x128xi32>
    %53 = arith.sitofp %52 : vector<8x128xi32> to vector<8x128xf32>
    %cst_8 = arith.constant 8.000000e+00 : f32
    %54 = vector.broadcast %cst_8 : f32 to vector<8x128xf32>
    %55 = arith.mulf %54, %53 : vector<8x128xf32>
    %c0_9 = arith.constant 0 : index
    %c0_10 = arith.constant 0 : index
    %56 = vector.load %arg1[%c0_9, %c0_10] : memref<8x1xf32, #tpu.memory_space<vmem>>, vector<8x1xf32>
    %cst_11 = arith.constant 0.000000e+00 : f32
    %57 = vector.broadcast %cst_11 : f32 to vector<8x1xf32>
    %58 = arith.cmpf ogt, %56, %57 : vector<8x1xf32>
    %59 = vector.shape_cast %58 : vector<8x1xi1> to vector<8x1xi1>
    %60 = vector.broadcast %59 : vector<8x1xi1> to vector<8x128xi1>
    %61 = arith.select %60, %55, %49 : vector<8x128xi1>, vector<8x128xf32>
    %c0_12 = arith.constant 0 : index
    %c0_13 = arith.constant 0 : index
    %62 = vector.load %arg5[%c0_12, %c0_13] : memref<128x128xf32, #tpu.memory_space<vmem>>, vector<128x128xf32>
    %63 = arith.truncf %62 : vector<128x128xf32> to vector<128x128xbf16>
    %c0_14 = arith.constant 0 : index
    %c0_15 = arith.constant 0 : index
    %64 = vector.load %arg6[%c0_14, %c0_15] : memref<128x128xf32, #tpu.memory_space<vmem>>, vector<128x128xf32>
    %65 = arith.truncf %64 : vector<128x128xf32> to vector<128x128xbf16>
    %cst_16 = arith.constant dense<0.000000e+00> : vector<128x128xf32>
    %66 = tpu.matmul %63, %65, %cst_16 {dimension_numbers = #tpu.dot_dimension_numbers<[1], [0], [0], [1], [0, 0, 1, 1], [], []>} : vector<128x128xbf16>, vector<128x128xbf16>, vector<128x128xf32> -> vector<128x128xf32>
    %67 = arith.truncf %66 : vector<128x128xf32> to vector<128x128xbf16>
    %c0_17 = arith.constant 0 : index
    %c0_18 = arith.constant 0 : index
    %68 = vector.load %arg7[%c0_17, %c0_18] : memref<1x128xf32, #tpu.memory_space<vmem>>, vector<1x128xf32>
    %cst_19 = arith.constant 1.250000e-01 : f32
    %69 = vector.broadcast %cst_19 : f32 to vector<8x128xf32>
    %70 = arith.mulf %49, %69 : vector<8x128xf32>
    %71 = arith.truncf %70 : vector<8x128xf32> to vector<8x128xbf16>
    %cst_20 = arith.constant dense<0.000000e+00> : vector<8x128xf32>
    %72 = tpu.matmul %71, %67, %cst_20 {dimension_numbers = #tpu.dot_dimension_numbers<[1], [0], [0], [1], [0, 0, 1, 1], [], []>} : vector<8x128xbf16>, vector<128x128xbf16>, vector<8x128xf32> -> vector<8x128xf32>
    %73 = vector.broadcast %68 : vector<1x128xf32> to vector<8x128xf32>
    %74 = arith.addf %72, %73 : vector<8x128xf32>
    %75 = math.tanh %74 : vector<8x128xf32>
    %cst_21 = arith.constant 1.250000e-01 : f32
    %76 = vector.broadcast %cst_21 : f32 to vector<8x128xf32>
    %77 = arith.mulf %61, %76 : vector<8x128xf32>
    %78 = arith.truncf %77 : vector<8x128xf32> to vector<8x128xbf16>
    %cst_22 = arith.constant dense<0.000000e+00> : vector<8x128xf32>
    %79 = tpu.matmul %78, %67, %cst_22 {dimension_numbers = #tpu.dot_dimension_numbers<[1], [0], [0], [1], [0, 0, 1, 1], [], []>} : vector<8x128xbf16>, vector<128x128xbf16>, vector<8x128xf32> -> vector<8x128xf32>
    %80 = vector.broadcast %68 : vector<1x128xf32> to vector<8x128xf32>
    %81 = arith.addf %79, %80 : vector<8x128xf32>
    %82 = math.tanh %81 : vector<8x128xf32>
    %c0_23 = arith.constant 0 : index
    %c0_24 = arith.constant 0 : index
    %c0_25 = arith.constant 0 : index
    %83 = vector.load %arg4[%c0_23, %c0_24, %c0_25] : memref<6x8x8xf32, #tpu.memory_space<vmem>>, vector<1x8x8xf32>
    %84 = vector.shape_cast %83 : vector<1x8x8xf32> to vector<8x8xf32>
    %c1_26 = arith.constant 1 : index
    %c0_27 = arith.constant 0 : index
    %c0_28 = arith.constant 0 : index
    %85 = vector.load %arg4[%c1_26, %c0_27, %c0_28] : memref<6x8x8xf32, #tpu.memory_space<vmem>>, vector<1x8x8xf32>
    %86 = vector.shape_cast %85 : vector<1x8x8xf32> to vector<8x8xf32>
    %87 = arith.addf %84, %86 : vector<8x8xf32>
    %c2_29 = arith.constant 2 : index
    %c0_30 = arith.constant 0 : index
    %c0_31 = arith.constant 0 : index
    %88 = vector.load %arg4[%c2_29, %c0_30, %c0_31] : memref<6x8x8xf32, #tpu.memory_space<vmem>>, vector<1x8x8xf32>
    %89 = vector.shape_cast %88 : vector<1x8x8xf32> to vector<8x8xf32>
    %90 = arith.addf %87, %89 : vector<8x8xf32>
    %c3_32 = arith.constant 3 : index
    %c0_33 = arith.constant 0 : index
    %c0_34 = arith.constant 0 : index
    %91 = vector.load %arg4[%c3_32, %c0_33, %c0_34] : memref<6x8x8xf32, #tpu.memory_space<vmem>>, vector<1x8x8xf32>
    %92 = vector.shape_cast %91 : vector<1x8x8xf32> to vector<8x8xf32>
    %93 = arith.addf %90, %92 : vector<8x8xf32>
    %c4_35 = arith.constant 4 : index
    %c0_36 = arith.constant 0 : index
    %c0_37 = arith.constant 0 : index
    %94 = vector.load %arg4[%c4_35, %c0_36, %c0_37] : memref<6x8x8xf32, #tpu.memory_space<vmem>>, vector<1x8x8xf32>
    %95 = vector.shape_cast %94 : vector<1x8x8xf32> to vector<8x8xf32>
    %96 = arith.addf %93, %95 : vector<8x8xf32>
    %c5_38 = arith.constant 5 : index
    %c0_39 = arith.constant 0 : index
    %c0_40 = arith.constant 0 : index
    %97 = vector.load %arg4[%c5_38, %c0_39, %c0_40] : memref<6x8x8xf32, #tpu.memory_space<vmem>>, vector<1x8x8xf32>
    %98 = vector.shape_cast %97 : vector<1x8x8xf32> to vector<8x8xf32>
    %99 = arith.addf %96, %98 : vector<8x8xf32>
    %cst_41 = arith.constant 0.000000e+00 : f32
    %100 = vector.broadcast %cst_41 : f32 to vector<8x8xf32>
    %101 = arith.cmpf ogt, %99, %100 : vector<8x8xf32>
    %102 = arith.extui %101 : vector<8x8xi1> to vector<8x8xi32>
    %103 = arith.sitofp %102 : vector<8x8xi32> to vector<8x8xf32>
    %104 = tpu.iota {dimensions = array<i32: 0>} : vector<8x8xi32>
    %105 = tpu.iota {dimensions = array<i32: 1>} : vector<8x8xi32>
    %106 = arith.cmpi eq, %104, %105 : vector<8x8xi32>
    %107 = arith.extui %106 : vector<8x8xi1> to vector<8x8xi32>
    %108 = arith.sitofp %107 : vector<8x8xi32> to vector<8x8xf32>
    %109 = arith.maximumf %103, %108 : vector<8x8xf32>
    %c0_42 = arith.constant 0 : index
    %c0_43 = arith.constant 0 : index
    %110 = vector.load %arg2[%c0_42, %c0_43] : memref<8x1xf32, #tpu.memory_space<vmem>>, vector<8x1xf32>
    %c0_44 = arith.constant 0 : index
    %c0_45 = arith.constant 0 : index
    %111 = vector.load %arg3[%c0_44, %c0_45] : memref<1x8xf32, #tpu.memory_space<vmem>>, vector<1x8xf32>
    %112 = vector.broadcast %110 : vector<8x1xf32> to vector<8x8xf32>
    %113 = vector.broadcast %111 : vector<1x8xf32> to vector<8x8xf32>
    %114 = arith.maximumf %112, %113 : vector<8x8xf32>
    %115 = arith.mulf %114, %103 : vector<8x8xf32>
    %116 = arith.maximumf %115, %108 : vector<8x8xf32>
    %c0_46 = arith.constant 0 : index
    %c0_47 = arith.constant 0 : index
    %117 = vector.load %arg8[%c0_46, %c0_47] : memref<128x128xf32, #tpu.memory_space<vmem>>, vector<128x128xf32>
    %118 = arith.truncf %117 : vector<128x128xf32> to vector<128x128xbf16>
    %c0_48 = arith.constant 0 : index
    %c0_49 = arith.constant 0 : index
    %119 = vector.load %arg9[%c0_48, %c0_49] : memref<1x128xf32, #tpu.memory_space<vmem>>, vector<1x128xf32>
    %c0_50 = arith.constant 0 : index
    %c0_51 = arith.constant 0 : index
    %120 = vector.load %arg10[%c0_50, %c0_51] : memref<1x128xf32, #tpu.memory_space<vmem>>, vector<1x128xf32>
    %121 = arith.truncf %75 : vector<8x128xf32> to vector<8x128xbf16>
    %cst_52 = arith.constant dense<0.000000e+00> : vector<8x128xf32>
    %122 = tpu.matmul %121, %118, %cst_52 {dimension_numbers = #tpu.dot_dimension_numbers<[1], [0], [0], [1], [0, 0, 1, 1], [], []>} : vector<8x128xbf16>, vector<128x128xbf16>, vector<8x128xf32> -> vector<8x128xf32>
    %cst_53 = arith.constant dense<0.000000e+00> : vector<8x1xf32>
    %123 = tpu.matmul %122, %119, %cst_53 {dimension_numbers = #tpu.dot_dimension_numbers<[1], [1], [0], [0], [0, 0, 1, 0], [], []>} : vector<8x128xf32>, vector<1x128xf32>, vector<8x1xf32> -> vector<8x1xf32>
    %cst_54 = arith.constant dense<0.000000e+00> : vector<1x8xf32>
    %124 = tpu.matmul %120, %122, %cst_54 {dimension_numbers = #tpu.dot_dimension_numbers<[1], [1], [0], [0], [0, 0, 1, 0], [], []>} : vector<1x128xf32>, vector<8x128xf32>, vector<1x8xf32> -> vector<1x8xf32>
    %125 = vector.broadcast %123 : vector<8x1xf32> to vector<8x8xf32>
    %126 = vector.broadcast %124 : vector<1x8xf32> to vector<8x8xf32>
    %127 = arith.addf %125, %126 : vector<8x8xf32>
    %cst_55 = arith.constant 0.000000e+00 : f32
    %128 = vector.broadcast %cst_55 : f32 to vector<8x8xf32>
    %129 = arith.cmpf ogt, %127, %128 : vector<8x8xf32>
    %cst_56 = arith.constant 2.000000e-01 : f32
    %130 = vector.broadcast %cst_56 : f32 to vector<8x8xf32>
    %131 = arith.mulf %130, %127 : vector<8x8xf32>
    %132 = arith.select %129, %127, %131 : vector<8x8xi1>, vector<8x8xf32>
    %cst_57 = arith.constant 0.000000e+00 : f32
    %133 = vector.broadcast %cst_57 : f32 to vector<8x8xf32>
    %134 = arith.cmpf ogt, %109, %133 : vector<8x8xf32>
    %cst_58 = arith.constant -1.000000e+30 : f32
    %135 = vector.broadcast %cst_58 : f32 to vector<8x8xf32>
    %136 = arith.select %134, %132, %135 : vector<8x8xi1>, vector<8x8xf32>
    %cst_59 = arith.constant dense<0xFF800000> : vector<8xf32>
    %137 = vector.multi_reduction <maximumf>, %136, %cst_59 [1] : vector<8x8xf32> to vector<8xf32>
    %138 = vector.shape_cast %137 : vector<8xf32> to vector<8x1xf32>
    %139 = vector.broadcast %138 : vector<8x1xf32> to vector<8x8xf32>
    %140 = arith.subf %136, %139 : vector<8x8xf32>
    %141 = math.exp %140 : vector<8x8xf32>
    %cst_60 = arith.constant dense<0.000000e+00> : vector<8xf32>
    %142 = vector.multi_reduction <add>, %141, %cst_60 [1] : vector<8x8xf32> to vector<8xf32>
    %143 = vector.shape_cast %142 : vector<8xf32> to vector<8x1xf32>
    %144 = tpu.reciprocal %143 {approx = true} : vector<8x1xf32> -> vector<8x1xf32>
    %145 = vector.broadcast %144 : vector<8x1xf32> to vector<8x8xf32>
    %146 = arith.mulf %141, %145 : vector<8x8xf32>
    %147 = arith.truncf %146 : vector<8x8xf32> to vector<8x8xbf16>
    %148 = arith.truncf %122 : vector<8x128xf32> to vector<8x128xbf16>
    %cst_61 = arith.constant dense<0.000000e+00> : vector<8x128xf32>
    %149 = tpu.matmul %147, %148, %cst_61 {dimension_numbers = #tpu.dot_dimension_numbers<[1], [0], [0], [1], [0, 0, 1, 1], [], []>} : vector<8x8xbf16>, vector<8x128xbf16>, vector<8x128xf32> -> vector<8x128xf32>
    %cst_62 = arith.constant 0.000000e+00 : f32
    %150 = vector.broadcast %cst_62 : f32 to vector<8x128xf32>
    %151 = arith.cmpf ogt, %149, %150 : vector<8x128xf32>
    %cst_63 = arith.constant 0.000000e+00 : f32
    %152 = vector.broadcast %cst_63 : f32 to vector<8x128xf32>
    %153 = arith.minimumf %149, %152 : vector<8x128xf32>
    %154 = math.exp %153 : vector<8x128xf32>
    %cst_64 = arith.constant 1.000000e+00 : f32
    %155 = vector.broadcast %cst_64 : f32 to vector<8x128xf32>
    %156 = arith.subf %154, %155 : vector<8x128xf32>
    %157 = arith.select %151, %149, %156 : vector<8x128xi1>, vector<8x128xf32>
    %158 = arith.truncf %82 : vector<8x128xf32> to vector<8x128xbf16>
    %cst_65 = arith.constant dense<0.000000e+00> : vector<8x128xf32>
    %159 = tpu.matmul %158, %118, %cst_65 {dimension_numbers = #tpu.dot_dimension_numbers<[1], [0], [0], [1], [0, 0, 1, 1], [], []>} : vector<8x128xbf16>, vector<128x128xbf16>, vector<8x128xf32> -> vector<8x128xf32>
    %cst_66 = arith.constant dense<0.000000e+00> : vector<8x1xf32>
    %160 = tpu.matmul %159, %119, %cst_66 {dimension_numbers = #tpu.dot_dimension_numbers<[1], [1], [0], [0], [0, 0, 1, 0], [], []>} : vector<8x128xf32>, vector<1x128xf32>, vector<8x1xf32> -> vector<8x1xf32>
    %cst_67 = arith.constant dense<0.000000e+00> : vector<1x8xf32>
    %161 = tpu.matmul %120, %159, %cst_67 {dimension_numbers = #tpu.dot_dimension_numbers<[1], [1], [0], [0], [0, 0, 1, 0], [], []>} : vector<1x128xf32>, vector<8x128xf32>, vector<1x8xf32> -> vector<1x8xf32>
    %162 = vector.broadcast %160 : vector<8x1xf32> to vector<8x8xf32>
    %163 = vector.broadcast %161 : vector<1x8xf32> to vector<8x8xf32>
    %164 = arith.addf %162, %163 : vector<8x8xf32>
    %cst_68 = arith.constant 0.000000e+00 : f32
    %165 = vector.broadcast %cst_68 : f32 to vector<8x8xf32>
    %166 = arith.cmpf ogt, %164, %165 : vector<8x8xf32>
    %cst_69 = arith.constant 2.000000e-01 : f32
    %167 = vector.broadcast %cst_69 : f32 to vector<8x8xf32>
    %168 = arith.mulf %167, %164 : vector<8x8xf32>
    %169 = arith.select %166, %164, %168 : vector<8x8xi1>, vector<8x8xf32>
    %cst_70 = arith.constant 0.000000e+00 : f32
    %170 = vector.broadcast %cst_70 : f32 to vector<8x8xf32>
    %171 = arith.cmpf ogt, %116, %170 : vector<8x8xf32>
    %cst_71 = arith.constant -1.000000e+30 : f32
    %172 = vector.broadcast %cst_71 : f32 to vector<8x8xf32>
    %173 = arith.select %171, %169, %172 : vector<8x8xi1>, vector<8x8xf32>
    %cst_72 = arith.constant dense<0xFF800000> : vector<8xf32>
    %174 = vector.multi_reduction <maximumf>, %173, %cst_72 [1] : vector<8x8xf32> to vector<8xf32>
    %175 = vector.shape_cast %174 : vector<8xf32> to vector<8x1xf32>
    %176 = vector.broadcast %175 : vector<8x1xf32> to vector<8x8xf32>
    %177 = arith.subf %173, %176 : vector<8x8xf32>
    %178 = math.exp %177 : vector<8x8xf32>
    %cst_73 = arith.constant dense<0.000000e+00> : vector<8xf32>
    %179 = vector.multi_reduction <add>, %178, %cst_73 [1] : vector<8x8xf32> to vector<8xf32>
    %180 = vector.shape_cast %179 : vector<8xf32> to vector<8x1xf32>
    %181 = tpu.reciprocal %180 {approx = true} : vector<8x1xf32> -> vector<8x1xf32>
    %182 = vector.broadcast %181 : vector<8x1xf32> to vector<8x8xf32>
    %183 = arith.mulf %178, %182 : vector<8x8xf32>
    %184 = arith.truncf %183 : vector<8x8xf32> to vector<8x8xbf16>
    %185 = arith.truncf %159 : vector<8x128xf32> to vector<8x128xbf16>
    %cst_74 = arith.constant dense<0.000000e+00> : vector<8x128xf32>
    %186 = tpu.matmul %184, %185, %cst_74 {dimension_numbers = #tpu.dot_dimension_numbers<[1], [0], [0], [1], [0, 0, 1, 1], [], []>} : vector<8x8xbf16>, vector<8x128xbf16>, vector<8x128xf32> -> vector<8x128xf32>
    %cst_75 = arith.constant 0.000000e+00 : f32
    %187 = vector.broadcast %cst_75 : f32 to vector<8x128xf32>
    %188 = arith.cmpf ogt, %186, %187 : vector<8x128xf32>
    %cst_76 = arith.constant 0.000000e+00 : f32
    %189 = vector.broadcast %cst_76 : f32 to vector<8x128xf32>
    %190 = arith.minimumf %186, %189 : vector<8x128xf32>
    %191 = math.exp %190 : vector<8x128xf32>
    %cst_77 = arith.constant 1.000000e+00 : f32
    %192 = vector.broadcast %cst_77 : f32 to vector<8x128xf32>
    %193 = arith.subf %191, %192 : vector<8x128xf32>
    %194 = arith.select %188, %186, %193 : vector<8x128xi1>, vector<8x128xf32>
    %195 = arith.truncf %157 : vector<8x128xf32> to vector<8x128xbf16>
    %196 = arith.truncf %194 : vector<8x128xf32> to vector<8x128xbf16>
    %cst_78 = arith.constant dense<0.000000e+00> : vector<8x8xf32>
    %197 = tpu.matmul %195, %196, %cst_78 {dimension_numbers = #tpu.dot_dimension_numbers<[1], [1], [0], [0], [0, 0, 1, 0], [], []>} : vector<8x128xbf16>, vector<8x128xbf16>, vector<8x8xf32> -> vector<8x8xf32>
    %cst_79 = arith.constant dense<0xFF800000> : vector<8xf32>
    %198 = vector.multi_reduction <maximumf>, %197, %cst_79 [1] : vector<8x8xf32> to vector<8xf32>
    %199 = vector.shape_cast %198 : vector<8xf32> to vector<8x1xf32>
    %200 = vector.broadcast %199 : vector<8x1xf32> to vector<8x8xf32>
    %201 = arith.subf %197, %200 : vector<8x8xf32>
    %202 = math.exp %201 : vector<8x8xf32>
    %cst_80 = arith.constant dense<0.000000e+00> : vector<8xf32>
    %203 = vector.multi_reduction <add>, %202, %cst_80 [1] : vector<8x8xf32> to vector<8xf32>
    %204 = vector.shape_cast %203 : vector<8xf32> to vector<8x1xf32>
    %205 = math.log %204 : vector<8x1xf32>
    %206 = vector.broadcast %205 : vector<8x1xf32> to vector<8x8xf32>
    %207 = arith.subf %201, %206 : vector<8x8xf32>
    %c0_81 = arith.constant 0 : index
    %c0_82 = arith.constant 0 : index
    %208 = vector.load %arg11[%c0_81, %c0_82] : memref<8x8xf32, #tpu.memory_space<vmem>>, vector<8x8xf32>
    tpu.vector_store %arg11[%c0_81, %c0_82], %207 {strides = array<i32>} : memref<8x8xf32, #tpu.memory_space<vmem>>, vector<8x8xf32>,
    %cst_83 = arith.constant dense<0xFF800000> : vector<8xf32>
    %209 = vector.multi_reduction <maximumf>, %207, %cst_83 [0] : vector<8x8xf32> to vector<8xf32>
    %210 = vector.shape_cast %209 : vector<8xf32> to vector<1x8xf32>
    %211 = tpu.iota {dimensions = array<i32: 0>} : vector<8x8xi32>
    %212 = vector.broadcast %210 : vector<1x8xf32> to vector<8x8xf32>
    %213 = arith.cmpf oge, %207, %212 : vector<8x8xf32>
    %c8_i32 = arith.constant 8 : i32
    %214 = vector.broadcast %c8_i32 : i32 to vector<8x8xi32>
    %215 = arith.select %213, %211, %214 : vector<8x8xi1>, vector<8x8xi32>
    %cst_84 = arith.constant dense<2147483647> : vector<8xi32>
    %216 = vector.multi_reduction <minsi>, %215, %cst_84 [0] : vector<8x8xi32> to vector<8xi32>
    %217 = vector.shape_cast %216 : vector<8xi32> to vector<1x8xi32>
    %c0_85 = arith.constant 0 : index
    %c0_86 = arith.constant 0 : index
    %218 = vector.load %arg12[%c0_85, %c0_86] : memref<1x8xi32, #tpu.memory_space<vmem>>, vector<1x8xi32>
    tpu.vector_store %arg12[%c0_85, %c0_86], %217 {strides = array<i32>} : memref<1x8xi32, #tpu.memory_space<vmem>>, vector<1x8xi32>,
    return
  }
}

</mosaic_0001>

<llo_original>
// kernel: forward.1
$region0: #{forward.1}
  #allocation0 [shape = 'u32[]', space=smem, size = 0x4, offset = 0x4, fixed_abs, tag = 'smem constant byte address 0x4 - core index']
  #allocation1 [shape = 'u32[144,128]{1,0:T(1,128)}', space=vmem, size = 0x12000, scoped, tag = 'internal scratch']
  %s0 = inlined_call_operand.hbm [shape: s32[8,8], index: 0, kind: input, shape index: {}]
  %s1 = inlined_call_operand.vmem [shape: f32[8,1], index: 1, kind: input, shape index: {}]
  %s2 = inlined_call_operand.vmem [shape: f32[8,1], index: 2, kind: input, shape index: {}]
  %s3 = inlined_call_operand.vmem [shape: f32[1,8], index: 3, kind: input, shape index: {}]
  %s4 = inlined_call_operand.vmem [shape: f32[6,8,8], index: 4, kind: input, shape index: {}]
  %s5 = inlined_call_operand.vmem [shape: f32[128,128], index: 5, kind: input, shape index: {}]
  %s6 = inlined_call_operand.hbm [shape: f32[128,128], index: 6, kind: input, shape index: {}]
  %s7 = inlined_call_operand.hbm [shape: f32[1,128], index: 7, kind: input, shape index: {}]
  %s8 = inlined_call_operand.hbm [shape: f32[128,128], index: 8, kind: input, shape index: {}]
  %s9 = inlined_call_operand.hbm [shape: f32[1,128], index: 9, kind: input, shape index: {}]
  %s10 = inlined_call_operand.vmem [shape: f32[1,128], index: 10, kind: input, shape index: {}]
  %s11 = inlined_call_operand.hbm [shape: f32[8,8], index: 11, kind: output, shape index: {0}]
  %s12 = inlined_call_operand.hbm [shape: s32[1,8], index: 12, kind: output, shape index: {1}]
  %13 = xla_tuple %s11, %s12
  %s14 = sld [smem:[#allocation0]]
  $region82: #{forward.1} parent=0
    _
  %s16 = ssub.s32 1, %s14
  %s17 = scalar_select 0, %s16, %s14
  $region1: #{forward.1} parent=0
    #allocation2 [shape = 'u8[4096]{0}', space=vmem, size = 0x1000, scoped, tag = 'input window, operand 0, single buffered']
    #allocation3 [shape = 's32[1]{0}', space=sflag, size = 0x4, scoped, tag = 'scoped memory for forward.1']
    #allocation4 [shape = 's32[1]{0}', space=sflag, size = 0x4, scoped, tag = 'scoped memory for forward.1']
    #allocation5 [shape = 'u8[65536]{0}', space=vmem, size = 0x10000, scoped, tag = 'input window, operand 6, single buffered']
    #allocation6 [shape = 's32[1]{0}', space=sflag, size = 0x4, scoped, tag = 'scoped memory for forward.1']
    #allocation7 [shape = 'u8[512]{0}', space=vmem, size = 0x400, scoped, tag = 'input window, operand 7, single buffered']
    #allocation8 [shape = 'u8[65536]{0}', space=vmem, size = 0x10000, scoped, tag = 'input window, operand 8, single buffered']
    #allocation9 [shape = 's32[1]{0}', space=sflag, size = 0x4, scoped, tag = 'scoped memory for forward.1']
    #allocation10 [shape = 'u8[512]{0}', space=vmem, size = 0x400, scoped, tag = 'input window, operand 9, single buffered']
    #allocation11 [shape = 'u8[4096]{0}', space=vmem, size = 0x1000, scoped, tag = 'output window, operand 0, single buffered']
    #allocation12 [shape = 'u8[512]{0}', space=vmem, size = 0x400, scoped, tag = 'output window, operand 1, single buffered']
    #allocation13 [shape = 's32[1]{0}', space=sflag, size = 0x4, scoped, tag = 'scoped memory for forward.1']
    %18 = vsyncpa [#allocation3], 0
    %19 = vsyncpa [#allocation6], 0
    %20 = vsyncpa [#allocation9], 0
    %21 = vsyncpa [#allocation4], 0
    %22 = vsyncpa [#allocation13], 0
    // Predicated region
    $region2: #{forward.1} parent=1 // pred_check
      _
    $region3: #{forward.1} parent=1 // pred_check_branch
      %24 = sbr.rel (0) target = $region5
    $region4: #{forward.1} parent=1 // pred_region
      %s26 = ssub.s32 128, 128
      %27 = vsyncadd [#allocation3], %s26
      %s29 = sshll.u32 [#allocation2], 4
      %s30 = int_to_ptr.vmem [resolvable:$true] %s29
      %32 = dma.hbm_to_vmem [thread:$0]  %s0, 128, %s30, [#allocation3]
    $region5: #{forward.1} parent=1 // pred_fallthru
      _
    // Predicated region
    $region6: #{forward.1} parent=1 // pred_check
      _
    $region7: #{forward.1} parent=1 // pred_check_branch
      %34 = sbr.rel (0) target = $region9
    $region8: #{forward.1} parent=1 // pred_region
      _
    $region9: #{forward.1} parent=1 // pred_fallthru
      _
    // Predicated region
    $region10: #{forward.1} parent=1 // pred_check
      _
    $region11: #{forward.1} parent=1 // pred_check_branch
      %36 = sbr.rel (0) target = $region13
    $region12: #{forward.1} parent=1 // pred_region
      _
    $region13: #{forward.1} parent=1 // pred_fallthru
      _
    // Predicated region
    $region14: #{forward.1} parent=1 // pred_check
      _
    $region15: #{forward.1} parent=1 // pred_check_branch
      %38 = sbr.rel (0) target = $region17
    $region16: #{forward.1} parent=1 // pred_region
      _
    $region17: #{forward.1} parent=1 // pred_fallthru
      _
    // Predicated region
    $region18: #{forward.1} parent=1 // pred_check
      _
    $region19: #{forward.1} parent=1 // pred_check_branch
      %40 = sbr.rel (0) target = $region21
    $region20: #{forward.1} parent=1 // pred_region
      _
    $region21: #{forward.1} parent=1 // pred_fallthru
      _
    // Predicated region
    $region22: #{forward.1} parent=1 // pred_check
      _
    $region23: #{forward.1} parent=1 // pred_check_branch
      %42 = sbr.rel (0) target = $region25
    $region24: #{forward.1} parent=1 // pred_region
      _
    $region25: #{forward.1} parent=1 // pred_fallthru
      _
    // Predicated region
    $region26: #{forward.1} parent=1 // pred_check
      _
    $region27: #{forward.1} parent=1 // pred_check_branch
      %44 = sbr.rel (0) target = $region29
    $region28: #{forward.1} parent=1 // pred_region
      %s46 = ssub.s32 2048, 2048
      %47 = vsyncadd [#allocation6], %s46
      %s48 = sshll.u32 [#allocation5], 4
      %s49 = int_to_ptr.vmem [resolvable:$true] %s48
      %54 = dma.hbm_to_vmem [thread:$0]  %s6, 2048, %s49, [#allocation6], 128, 128, 8
    $region29: #{forward.1} parent=1 // pred_fallthru
      _
    // Predicated region
    $region30: #{forward.1} parent=1 // pred_check
      _
    $region31: #{forward.1} parent=1 // pred_check_branch
      %56 = sbr.rel (0) target = $region33
    $region32: #{forward.1} parent=1 // pred_region
      %s58 = ssub.s32 16, 16
      %59 = vsyncadd [#allocation6], %s58
      %s61 = sshll.u32 [#allocation7], 4
      %s62 = int_to_ptr.vmem [resolvable:$true] %s61
      %64 = dma.hbm_to_vmem [thread:$0]  %s7, 16, %s62, [#allocation6]
    $region33: #{forward.1} parent=1 // pred_fallthru
      _
    // Predicated region
    $region34: #{forward.1} parent=1 // pred_check
      _
    $region35: #{forward.1} parent=1 // pred_check_branch
      %66 = sbr.rel (0) target = $region37
    $region36: #{forward.1} parent=1 // pred_region
      %s68 = ssub.s32 2048, 2048
      %69 = vsyncadd [#allocation9], %s68
      %s70 = sshll.u32 [#allocation8], 4
      %s71 = int_to_ptr.vmem [resolvable:$true] %s70
      %76 = dma.hbm_to_vmem [thread:$0]  %s8, 2048, %s71, [#allocation9], 128, 128, 8
    $region37: #{forward.1} parent=1 // pred_fallthru
      _
    // Predicated region
    $region38: #{forward.1} parent=1 // pred_check
      _
    $region39: #{forward.1} parent=1 // pred_check_branch
      %78 = sbr.rel (0) target = $region41
    $region40: #{forward.1} parent=1 // pred_region
      %s80 = ssub.s32 16, 16
      %81 = vsyncadd [#allocation9], %s80
      %s83 = sshll.u32 [#allocation10], 4
      %s84 = int_to_ptr.vmem [resolvable:$true] %s83
      %86 = dma.hbm_to_vmem [thread:$0]  %s9, 16, %s84, [#allocation9]
    $region41: #{forward.1} parent=1 // pred_fallthru
      _
    // Predicated region
    $region42: #{forward.1} parent=1 // pred_check
      _
    $region43: #{forward.1} parent=1 // pred_check_branch
      %88 = sbr.rel (0) target = $region45
    $region44: #{forward.1} parent=1 // pred_region
      _
    $region45: #{forward.1} parent=1 // pred_fallthru
      _
    // Predicated region
    $region46: #{forward.1} parent=1 // pred_check
      _
    $region47: #{forward.1} parent=1 // pred_check_branch
      %90 = sbr.rel (0) target = $region49
    $region48: #{forward.1} parent=1 // pred_region
      %91 = dma.done [#allocation3], 128
    $region49: #{forward.1} parent=1 // pred_fallthru
      _
    // Predicated region
    $region50: #{forward.1} parent=1 // pred_check
      _
    $region51: #{forward.1} parent=1 // pred_check_branch
      %93 = sbr.rel (0) target = $region53
    $region52: #{forward.1} parent=1 // pred_region
      %94 = dma.done [#allocation6], 2048
    $region53: #{forward.1} parent=1 // pred_fallthru
      _
    // Predicated region
    $region54: #{forward.1} parent=1 // pred_check
      _
    $region55: #{forward.1} parent=1 // pred_check_branch
      %96 = sbr.rel (0) target = $region57
    $region56: #{forward.1} parent=1 // pred_region
      %97 = dma.done [#allocation6], 16
    $region57: #{forward.1} parent=1 // pred_fallthru
      _
    // Predicated region
    $region58: #{forward.1} parent=1 // pred_check
      _
    $region59: #{forward.1} parent=1 // pred_check_branch
      %99 = sbr.rel (0) target = $region61
    $region60: #{forward.1} parent=1 // pred_region
      %100 = dma.done [#allocation9], 2048
    $region61: #{forward.1} parent=1 // pred_fallthru
      _
    // Predicated region
    $region62: #{forward.1} parent=1 // pred_check
      _
    $region63: #{forward.1} parent=1 // pred_check_branch
      %102 = sbr.rel (0) target = $region65
    $region64: #{forward.1} parent=1 // pred_region
      %103 = dma.done [#allocation9], 16
    $region65: #{forward.1} parent=1 // pred_fallthru
      _
    %v105 = vlaneseq
    %v106 = vand.u32 %v105, 127
    %v107 = vld [vmem:[#allocation2] sm:$0xff]
    %108 = vset.pattern.permute.xlu0 0
    %109 = vperm.xlu0 %108, %v107
    %v110 = vpop.permute.xlu0 %109
    %vm111 = vcmp.eq.s32.totalorder %v110, %v106
    %v112 = vsel %vm111, 1, 0
    %v113 = vcvt.s32.f32 %v112
    %v114 = vadd.f32 %v113, 0.0
    %115 = vset.pattern.permute.xlu0 1
    %116 = vperm.xlu0 %115, %v107
    %v117 = vpop.permute.xlu0 %116
    %vm118 = vcmp.eq.s32.totalorder %v117, %v106
    %v119 = vsel %vm118, 1, 0
    %v120 = vcvt.s32.f32 %v119
    %v121 = vadd.f32 %v114, %v120
    %122 = vset.pattern.permute.xlu0 2
    %123 = vperm.xlu0 %122, %v107
    %v124 = vpop.permute.xlu0 %123
    %vm125 = vcmp.eq.s32.totalorder %v124, %v106
    %v126 = vsel %vm125, 1, 0
    %v127 = vcvt.s32.f32 %v126
    %v128 = vadd.f32 %v121, %v127
    %129 = vset.pattern.permute.xlu0 3
    %130 = vperm.xlu0 %129, %v107
    %v131 = vpop.permute.xlu0 %130
    %vm132 = vcmp.eq.s32.totalorder %v131, %v106
    %v133 = vsel %vm132, 1, 0
    %v134 = vcvt.s32.f32 %v133
    %v135 = vadd.f32 %v128, %v134
    %136 = vset.pattern.permute.xlu0 4
    %137 = vperm.xlu0 %136, %v107
    %v138 = vpop.permute.xlu0 %137
    %vm139 = vcmp.eq.s32.totalorder %v138, %v106
    %v140 = vsel %vm139, 1, 0
    %v141 = vcvt.s32.f32 %v140
    %v142 = vadd.f32 %v135, %v141
    %143 = vset.pattern.permute.xlu0 5
    %144 = vperm.xlu0 %143, %v107
    %v145 = vpop.permute.xlu0 %144
    %vm146 = vcmp.eq.s32.totalorder %v145, %v106
    %v147 = vsel %vm146, 1, 0
    %v148 = vcvt.s32.f32 %v147
    %v149 = vadd.f32 %v142, %v148
    %150 = vset.pattern.permute.xlu0 6
    %151 = vperm.xlu0 %150, %v107
    %v152 = vpop.permute.xlu0 %151
    %vm153 = vcmp.eq.s32.totalorder %v152, %v106
    %v154 = vsel %vm153, 1, 0
    %v155 = vcvt.s32.f32 %v154
    %v156 = vadd.f32 %v149, %v155
    %157 = vset.pattern.permute.xlu0 7
    %158 = vperm.xlu0 %157, %v107
    %v159 = vpop.permute.xlu0 %158
    %vm160 = vcmp.eq.s32.totalorder %v159, %v106
    %v161 = vsel %vm160, 1, 0
    %v162 = vcvt.s32.f32 %v161
    %v163 = vadd.f32 %v156, %v162
    %vm164 = vcmp.eq.s32.totalorder %v106, 0
    %v165 = vsel %vm164, 1, 0
    %v166 = vcvt.s32.f32 %v165
    %v167 = vmul.f32 %v166, 8.0
    %v168 = vld [vmem:[%s1] sm:$0xff]
    %vm169 = vcmp.gt.f32.partialorder %v168, 0.0
    %v170 = vsel %vm169, 1, 0
    %171 = vset.pattern.permute.xlu0 0
    %172 = vperm.xlu0 %171, %v170
    %v173 = vpop.permute.xlu0 %172
    %vm174 = vcmp.eq.s32.totalorder %v173, 1
    %v175 = vsel %vm174, %v167, %v163
    %v176 = vld [vmem:[%s5] sm:$0xff]
    %v177 = vld [vmem:[%s5 + $0x8] sm:$0xff]
    %v178 = vld [vmem:[%s5 + $0x10] sm:$0xff]
    %v179 = vld [vmem:[%s5 + $0x18] sm:$0xff]
    %v180 = vld [vmem:[%s5 + $0x20] sm:$0xff]
    %v181 = vld [vmem:[%s5 + $0x28] sm:$0xff]
    %v182 = vld [vmem:[%s5 + $0x30] sm:$0xff]
    %v183 = vld [vmem:[%s5 + $0x38] sm:$0xff]
    %v184 = vld [vmem:[%s5 + $0x40] sm:$0xff]
    %v185 = vld [vmem:[%s5 + $0x48] sm:$0xff]
    %v186 = vld [vmem:[%s5 + $0x50] sm:$0xff]
    %v187 = vld [vmem:[%s5 + $0x58] sm:$0xff]
    %v188 = vld [vmem:[%s5 + $0x60] sm:$0xff]
    %v189 = vld [vmem:[%s5 + $0x68] sm:$0xff]
    %v190 = vld [vmem:[%s5 + $0x70] sm:$0xff]
    %v191 = vld [vmem:[%s5 + $0x78] sm:$0xff]
    %v192 = vpack.c.bf16 %v177, %v176
    %v193 = vpack.c.bf16 %v179, %v178
    %v194 = vpack.c.bf16 %v181, %v180
    %v195 = vpack.c.bf16 %v183, %v182
    %v196 = vpack.c.bf16 %v185, %v184
    %v197 = vpack.c.bf16 %v187, %v186
    %v198 = vpack.c.bf16 %v189, %v188
    %v199 = vpack.c.bf16 %v191, %v190
    %v200 = vld [vmem:[#allocation5] sm:$0xff]
    %v201 = vld [vmem:[#allocation5 + $0x8] sm:$0xff]
    %v202 = vld [vmem:[#allocation5 + $0x10] sm:$0xff]
    %v203 = vld [vmem:[#allocation5 + $0x18] sm:$0xff]
    %v204 = vld [vmem:[#allocation5 + $0x20] sm:$0xff]
    %v205 = vld [vmem:[#allocation5 + $0x28] sm:$0xff]
    %v206 = vld [vmem:[#allocation5 + $0x30] sm:$0xff]
    %v207 = vld [vmem:[#allocation5 + $0x38] sm:$0xff]
    %v208 = vld [vmem:[#allocation5 + $0x40] sm:$0xff]
    %v209 = vld [vmem:[#allocation5 + $0x48] sm:$0xff]
    %v210 = vld [vmem:[#allocation5 + $0x50] sm:$0xff]
    %v211 = vld [vmem:[#allocation5 + $0x58] sm:$0xff]
    %v212 = vld [vmem:[#allocation5 + $0x60] sm:$0xff]
    %v213 = vld [vmem:[#allocation5 + $0x68] sm:$0xff]
    %v214 = vld [vmem:[#allocation5 + $0x70] sm:$0xff]
    %v215 = vld [vmem:[#allocation5 + $0x78] sm:$0xff]
    %v216 = vpack.c.bf16 %v201, %v200
    %v217 = vpack.c.bf16 %v203, %v202
    %v218 = vpack.c.bf16 %v205, %v204
    %v219 = vpack.c.bf16 %v207, %v206
    %v220 = vpack.c.bf16 %v209, %v208
    %v221 = vpack.c.bf16 %v211, %v210
    %v222 = vpack.c.bf16 %v213, %v212
    %v223 = vpack.c.bf16 %v215, %v214
    %224 = vmatprep.subr.bf16.mxu0 0
    %225 = vmatpush1.bf16.msra.mxu0 %v216
    %226 = vmatprep.subr.bf16.mxu0 0
    %227 = vmatpush1.bf16.msra.mxu0 %v217
    %228 = vmatprep.subr.bf16.mxu0 0
    %229 = vmatpush1.bf16.msra.mxu0 %v218
    %230 = vmatprep.subr.bf16.mxu0 0
    %231 = vmatpush1.bf16.msra.mxu0 %v219
    %232 = vmatprep.subr.bf16.mxu0 0
    %233 = vmatpush1.bf16.msra.mxu0 %v220
    %234 = vmatprep.subr.bf16.mxu0 0
    %235 = vmatpush1.bf16.msra.mxu0 %v221
    %236 = vmatprep.subr.bf16.mxu0 0
    %237 = vmatpush1.bf16.msra.mxu0 %v222
    %238 = vmatprep.subr.bf16.mxu0 0
    %239 = vmatpush1.bf16.msra.mxu0 %v223
    %240 = vmatprep.subr.bf16.mxu0 0
    %241 = vmatpush1.bf16.msra.mxu0 0
    %242 = vmatprep.subr.bf16.mxu0 0
    %243 = vmatpush1.bf16.msra.mxu0 0
    %244 = vmatprep.subr.bf16.mxu0 0
    %245 = vmatpush1.bf16.msra.mxu0 0
    %246 = vmatprep.subr.bf16.mxu0 0
    %247 = vmatpush1.bf16.msra.mxu0 0
    %248 = vmatprep.subr.bf16.mxu0 0
    %249 = vmatpush1.bf16.msra.mxu0 0
    %250 = vmatprep.subr.bf16.mxu0 0
    %251 = vmatpush1.bf16.msra.mxu0 0
    %252 = vmatprep.subr.bf16.mxu0 0
    %253 = vmatpush1.bf16.msra.mxu0 0
    %254 = vmatprep.subr.bf16.mxu0 0
    %255 = vmatpush1.bf16.msra.mxu0 0
    %256 = vmatprep.mubr.bf16.mxu0 0
    %257 = vmatmul.mubr.bf16.gmra.mrb[0].mxu0 %v192
    %v258 = vpop.f32.mrb[0].mxu0
    %v259 = vadd.f32 0.0, %v258
    %v260 = vpop.f32.mrb[0].mxu0
    %v261 = vpop.f32.mrb[0].mxu0
    %v262 = vadd.f32 0.0, %v261
    %v263 = vpop.f32.mrb[0].mxu0
    %264 = vmatprep.mubr.bf16.mxu0 0
    %265 = vmatmul.mubr.bf16.gmra.mrb[0].mxu0 %v193
    %v266 = vpop.f32.mrb[0].mxu0
    %v267 = vadd.f32 0.0, %v266
    %v268 = vpop.f32.mrb[0].mxu0
    %v269 = vpop.f32.mrb[0].mxu0
    %v270 = vadd.f32 0.0, %v269
    %v271 = vpop.f32.mrb[0].mxu0
    %272 = vmatprep.mubr.bf16.mxu0 0
    %273 = vmatmul.mubr.bf16.gmra.mrb[0].mxu0 %v194
    %v274 = vpop.f32.mrb[0].mxu0
    %v275 = vadd.f32 0.0, %v274
    %v276 = vpop.f32.mrb[0].mxu0
    %v277 = vpop.f32.mrb[0].mxu0
    %v278 = vadd.f32 0.0, %v277
    %v279 = vpop.f32.mrb[0].mxu0
    %280 = vmatprep.mubr.bf16.mxu0 0
    %281 = vmatmul.mubr.bf16.gmra.mrb[0].mxu0 %v195
    %v282 = vpop.f32.mrb[0].mxu0
    %v283 = vadd.f32 0.0, %v282
    %v284 = vpop.f32.mrb[0].mxu0
    %v285 = vpop.f32.mrb[0].mxu0
    %v286 = vadd.f32 0.0, %v285
    %v287 = vpop.f32.mrb[0].mxu0
    %288 = vmatprep.mubr.bf16.mxu0 0
    %289 = vmatmul.mubr.bf16.gmra.mrb[0].mxu0 %v196
    %v290 = vpop.f32.mrb[0].mxu0
    %v291 = vadd.f32 0.0, %v290
    %v292 = vpop.f32.mrb[0].mxu0
    %v293 = vpop.f32.mrb[0].mxu0
    %v294 = vadd.f32 0.0, %v293
    %v295 = vpop.f32.mrb[0].mxu0
    %296 = vmatprep.mubr.bf16.mxu0 0
    %297 = vmatmul.mubr.bf16.gmra.mrb[0].mxu0 %v197
    %v298 = vpop.f32.mrb[0].mxu0
    %v299 = vadd.f32 0.0, %v298
    %v300 = vpop.f32.mrb[0].mxu0
    %v301 = vpop.f32.mrb[0].mxu0
    %v302 = vadd.f32 0.0, %v301
    %v303 = vpop.f32.mrb[0].mxu0
    %304 = vmatprep.mubr.bf16.mxu0 0
    %305 = vmatmul.mubr.bf16.gmra.mrb[0].mxu0 %v198
    %v306 = vpop.f32.mrb[0].mxu0
    %v307 = vadd.f32 0.0, %v306
    %v308 = vpop.f32.mrb[0].mxu0
    %v309 = vpop.f32.mrb[0].mxu0
    %v310 = vadd.f32 0.0, %v309
    %v311 = vpop.f32.mrb[0].mxu0
    %312 = vmatprep.mubr.bf16.mxu0 0
    %313 = vmatmul.mubr.bf16.gmra.mrb[0].mxu0 %v199
    %v314 = vpop.f32.mrb[0].mxu0
    %v315 = vadd.f32 0.0, %v314
    %v316 = vpop.f32.mrb[0].mxu0
    %v317 = vpop.f32.mrb[0].mxu0
    %v318 = vadd.f32 0.0, %v317
    %v319 = vpop.f32.mrb[0].mxu0
    %320 = vdwg.mxu0
    %v321 = vpack.c.bf16 %v262, %v259
    %v322 = vpack.c.bf16 %v270, %v267
    %v323 = vpack.c.bf16 %v278, %v275
    %v324 = vpack.c.bf16 %v286, %v283
    %v325 = vpack.c.bf16 %v294, %v291
    %v326 = vpack.c.bf16 %v302, %v299
    %v327 = vpack.c.bf16 %v310, %v307
    %v328 = vpack.c.bf16 %v318, %v315
    %v329 = vld [vmem:[#allocation7] sm:$0x1]
    %v330 = vmul.f32 %v163, 0.125
    %v331 = vpack.c.bf16 %v330, %v330
    %v333 = vlaneseq
    %v334 = vshrl.u32 %v333, 7
    %v335 = vsub.s32 0, %v334
    %v336 = vrot.slane %v329, %v335
    %338 = vmatprep.subr.bf16.mxu0 0
    %339 = vmatpush1.bf16.msra.mxu0 %v321
    %340 = vmatprep.subr.bf16.mxu0 0
    %341 = vmatpush1.bf16.msra.mxu0 %v322
    %342 = vmatprep.subr.bf16.mxu0 0
    %343 = vmatpush1.bf16.msra.mxu0 %v323
    %344 = vmatprep.subr.bf16.mxu0 0
    %345 = vmatpush1.bf16.msra.mxu0 %v324
    %346 = vmatprep.subr.bf16.mxu0 0
    %347 = vmatpush1.bf16.msra.mxu0 %v325
    %348 = vmatprep.subr.bf16.mxu0 0
    %349 = vmatpush1.bf16.msra.mxu0 %v326
    %350 = vmatprep.subr.bf16.mxu0 0
    %351 = vmatpush1.bf16.msra.mxu0 %v327
    %352 = vmatprep.subr.bf16.mxu0 0
    %353 = vmatpush1.bf16.msra.mxu0 %v328
    %354 = vmatprep.subr.bf16.mxu0 0
    %355 = vmatpush1.bf16.msra.mxu0 0
    %356 = vmatprep.subr.bf16.mxu0 0
    %357 = vmatpush1.bf16.msra.mxu0 0
    %358 = vmatprep.subr.bf16.mxu0 0
    %359 = vmatpush1.bf16.msra.mxu0 0
    %360 = vmatprep.subr.bf16.mxu0 0
    %361 = vmatpush1.bf16.msra.mxu0 0
    %362 = vmatprep.subr.bf16.mxu0 0
    %363 = vmatpush1.bf16.msra.mxu0 0
    %364 = vmatprep.subr.bf16.mxu0 0
    %365 = vmatpush1.bf16.msra.mxu0 0
    %366 = vmatprep.subr.bf16.mxu0 0
    %367 = vmatpush1.bf16.msra.mxu0 0
    %368 = vmatprep.subr.bf16.mxu0 0
    %369 = vmatpush1.bf16.msra.mxu0 0
    %370 = vmatprep.mubr.bf16.mxu0 0
    %371 = vmatmul.mubr.bf16.gmra.mrb[0].mxu0 %v331
    %v372 = vpop.f32.mrb[0].mxu0
    %v373 = vadd.f32 %v336, %v372
    %v374 = vpop.f32.mrb[0].mxu0
    %v375 = vpop.f32.mrb[0].mxu0
    %v376 = vpop.f32.mrb[0].mxu0
    %377 = vdwg.mxu0
    %v378 = vtanh.pop %v373
    %v379 = vmul.f32 %v175, 0.125
    %v380 = vpack.c.bf16 %v379, %v379
    %381 = vmatprep.subr.bf16.mxu0 0
    %382 = vmatpush1.bf16.msra.mxu0 %v321
    %383 = vmatprep.subr.bf16.mxu0 0
    %384 = vmatpush1.bf16.msra.mxu0 %v322
    %385 = vmatprep.subr.bf16.mxu0 0
    %386 = vmatpush1.bf16.msra.mxu0 %v323
    %387 = vmatprep.subr.bf16.mxu0 0
    %388 = vmatpush1.bf16.msra.mxu0 %v324
    %389 = vmatprep.subr.bf16.mxu0 0
    %390 = vmatpush1.bf16.msra.mxu0 %v325
    %391 = vmatprep.subr.bf16.mxu0 0
    %392 = vmatpush1.bf16.msra.mxu0 %v326
    %393 = vmatprep.subr.bf16.mxu0 0
    %394 = vmatpush1.bf16.msra.mxu0 %v327
    %395 = vmatprep.subr.bf16.mxu0 0
    %396 = vmatpush1.bf16.msra.mxu0 %v328
    %397 = vmatprep.subr.bf16.mxu0 0
    %398 = vmatpush1.bf16.msra.mxu0 0
    %399 = vmatprep.subr.bf16.mxu0 0
    %400 = vmatpush1.bf16.msra.mxu0 0
    %401 = vmatprep.subr.bf16.mxu0 0
    %402 = vmatpush1.bf16.msra.mxu0 0
    %403 = vmatprep.subr.bf16.mxu0 0
    %404 = vmatpush1.bf16.msra.mxu0 0
    %405 = vmatprep.subr.bf16.mxu0 0
    %406 = vmatpush1.bf16.msra.mxu0 0
    %407 = vmatprep.subr.bf16.mxu0 0
    %408 = vmatpush1.bf16.msra.mxu0 0
    %409 = vmatprep.subr.bf16.mxu0 0
    %410 = vmatpush1.bf16.msra.mxu0 0
    %411 = vmatprep.subr.bf16.mxu0 0
    %412 = vmatpush1.bf16.msra.mxu0 0
    %413 = vmatprep.mubr.bf16.mxu0 0
    %414 = vmatmul.mubr.bf16.gmra.mrb[0].mxu0 %v380
    %v415 = vpop.f32.mrb[0].mxu0
    %v416 = vadd.f32 %v336, %v415
    %v417 = vpop.f32.mrb[0].mxu0
    %v418 = vpop.f32.mrb[0].mxu0
    %v419 = vpop.f32.mrb[0].mxu0
    %420 = vdwg.mxu0
    %v421 = vtanh.pop %v416
    %v422 = vld [vmem:[%s4] sm:$0xff]
    %s423 = scalar_lea.vmem %s4, 8
    %v424 = vld [vmem:[%s423] sm:$0xff]
    %v425 = vadd.f32 %v422, %v424
    %s426 = scalar_lea.vmem %s4, 16
    %v427 = vld [vmem:[%s426] sm:$0xff]
    %v428 = vadd.f32 %v425, %v427
    %s429 = scalar_lea.vmem %s4, 24
    %v430 = vld [vmem:[%s429] sm:$0xff]
    %v431 = vadd.f32 %v428, %v430
    %s432 = scalar_lea.vmem %s4, 32
    %v433 = vld [vmem:[%s432] sm:$0xff]
    %v434 = vadd.f32 %v431, %v433
    %s435 = scalar_lea.vmem %s4, 40
    %v436 = vld [vmem:[%s435] sm:$0xff]
    %v437 = vadd.f32 %v434, %v436
    %vm438 = vcmp.gt.f32.partialorder %v437, 0.0
    %v439 = vsel %vm438, 1, 0
    %v440 = vcvt.s32.f32 %v439
    %v441 = vlaneseq
    %v442 = vshrl.u32 %v441, 7
    %vm443 = vcmp.eq.s32.totalorder %v442, %v106
    %v444 = vsel %vm443, 1, 0
    %v445 = vcvt.s32.f32 %v444
    %v446 = vmax.f32 %v440, %v445
    %v447 = vld [vmem:[%s2] sm:$0xff]
    %v448 = vld [vmem:[%s3] sm:$0x1]
    %450 = vset.pattern.permute.xlu0 0
    %451 = vperm.xlu0 %450, %v447
    %v452 = vpop.permute.xlu0 %451
    %v455 = vlaneseq
    %v456 = vshrl.u32 %v455, 7
    %v457 = vsub.s32 0, %v456
    %v458 = vrot.slane %v448, %v457
    %v460 = vmax.f32 %v452, %v458
    %v461 = vmul.f32 %v460, %v440
    %v462 = vmax.f32 %v461, %v445
    %v463 = vld [vmem:[#allocation8] sm:$0xff]
    %v464 = vld [vmem:[#allocation8 + $0x8] sm:$0xff]
    %v465 = vld [vmem:[#allocation8 + $0x10] sm:$0xff]
    %v466 = vld [vmem:[#allocation8 + $0x18] sm:$0xff]
    %v467 = vld [vmem:[#allocation8 + $0x20] sm:$0xff]
    %v468 = vld [vmem:[#allocation8 + $0x28] sm:$0xff]
    %v469 = vld [vmem:[#allocation8 + $0x30] sm:$0xff]
    %v470 = vld [vmem:[#allocation8 + $0x38] sm:$0xff]
    %v471 = vld [vmem:[#allocation8 + $0x40] sm:$0xff]
    %v472 = vld [vmem:[#allocation8 + $0x48] sm:$0xff]
    %v473 = vld [vmem:[#allocation8 + $0x50] sm:$0xff]
    %v474 = vld [vmem:[#allocation8 + $0x58] sm:$0xff]
    %v475 = vld [vmem:[#allocation8 + $0x60] sm:$0xff]
    %v476 = vld [vmem:[#allocation8 + $0x68] sm:$0xff]
    %v477 = vld [vmem:[#allocation8 + $0x70] sm:$0xff]
    %v478 = vld [vmem:[#allocation8 + $0x78] sm:$0xff]
    %v479 = vpack.c.bf16 %v464, %v463
    %v480 = vpack.c.bf16 %v466, %v465
    %v481 = vpack.c.bf16 %v468, %v467
    %v482 = vpack.c.bf16 %v470, %v469
    %v483 = vpack.c.bf16 %v472, %v471
    %v484 = vpack.c.bf16 %v474, %v473
    %v485 = vpack.c.bf16 %v476, %v475
    %v486 = vpack.c.bf16 %v478, %v477
    %v487 = vld [vmem:[#allocation10] sm:$0x1]
    %v488 = vld [vmem:[%s10] sm:$0x1]
    %v489 = vpack.c.bf16 %v378, %v378
    %490 = vmatprep.subr.bf16.mxu0 0
    %491 = vmatpush1.bf16.msra.mxu0 %v479
    %492 = vmatprep.subr.bf16.mxu0 0
    %493 = vmatpush1.bf16.msra.mxu0 %v480
    %494 = vmatprep.subr.bf16.mxu0 0
    %495 = vmatpush1.bf16.msra.mxu0 %v481
    %496 = vmatprep.subr.bf16.mxu0 0
    %497 = vmatpush1.bf16.msra.mxu0 %v482
    %498 = vmatprep.subr.bf16.mxu0 0
    %499 = vmatpush1.bf16.msra.mxu0 %v483
    %500 = vmatprep.subr.bf16.mxu0 0
    %501 = vmatpush1.bf16.msra.mxu0 %v484
    %502 = vmatprep.subr.bf16.mxu0 0
    %503 = vmatpush1.bf16.msra.mxu0 %v485
    %504 = vmatprep.subr.bf16.mxu0 0
    %505 = vmatpush1.bf16.msra.mxu0 %v486
    %506 = vmatprep.subr.bf16.mxu0 0
    %507 = vmatpush1.bf16.msra.mxu0 0
    %508 = vmatprep.subr.bf16.mxu0 0
    %509 = vmatpush1.bf16.msra.mxu0 0
    %510 = vmatprep.subr.bf16.mxu0 0
    %511 = vmatpush1.bf16.msra.mxu0 0
    %512 = vmatprep.subr.bf16.mxu0 0
    %513 = vmatpush1.bf16.msra.mxu0 0
    %514 = vmatprep.subr.bf16.mxu0 0
    %515 = vmatpush1.bf16.msra.mxu0 0
    %516 = vmatprep.subr.bf16.mxu0 0
    %517 = vmatpush1.bf16.msra.mxu0 0
    %518 = vmatprep.subr.bf16.mxu0 0
    %519 = vmatpush1.bf16.msra.mxu0 0
    %520 = vmatprep.subr.bf16.mxu0 0
    %521 = vmatpush1.bf16.msra.mxu0 0
    %522 = vmatprep.mubr.bf16.mxu0 0
    %523 = vmatmul.mubr.bf16.gmra.mrb[0].mxu0 %v489
    %v524 = vpop.f32.mrb[0].mxu0
    %v525 = vadd.f32 0.0, %v524
    %v526 = vpop.f32.mrb[0].mxu0
    %v527 = vpop.f32.mrb[0].mxu0
    %v528 = vpop.f32.mrb[0].mxu0
    %529 = vdwg.mxu0
    %v531 = vlaneseq
    %v532 = vshrl.u32 %v531, 7
    %v533 = vsub.s32 0, %v532
    %v534 = vrot.slane %v487, %v533
    %v536 = vmul.f32 %v525, %v534
    %537 = vadd.xlane.f32.xlu0 %v536
    %v538 = vpop.xlane.xlu0 %537
    %539 = vmatprep.subr.mxu0 0.0
    %540 = vmatpush1.xpose.msra.mxu0 %v525
    %541 = vmatprep.subr.mxu0 0.0
    %542 = vmatpush1.xpose.msra.mxu0 0.0
    %543 = vmatprep.subr.mxu0 0.0
    %544 = vmatpush1.xpose.msra.mxu0 0.0
    %545 = vmatprep.subr.mxu0 0.0
    %546 = vmatpush1.xpose.msra.mxu0 0.0
    %547 = vmatprep.subr.mxu0 0.0
    %548 = vmatpush1.xpose.msra.mxu0 0.0
    %549 = vmatprep.subr.mxu0 0.0
    %550 = vmatpush1.xpose.msra.mxu0 0.0
    %551 = vmatprep.subr.mxu0 0.0
    %552 = vmatpush1.xpose.msra.mxu0 0.0
    %553 = vmatprep.subr.mxu0 0.0
    %554 = vmatpush1.xpose.msra.mxu0 0.0
    %555 = vmatprep.subr.mxu0 0.0
    %556 = vmatpush1.xpose.msra.mxu0 0.0
    %557 = vmatprep.subr.mxu0 0.0
    %558 = vmatpush1.xpose.msra.mxu0 0.0
    %559 = vmatprep.subr.mxu0 0.0
    %560 = vmatpush1.xpose.msra.mxu0 0.0
    %561 = vmatprep.subr.mxu0 0.0
    %562 = vmatpush1.xpose.msra.mxu0 0.0
    %563 = vmatprep.subr.mxu0 0.0
    %564 = vmatpush1.xpose.msra.mxu0 0.0
    %565 = vmatprep.subr.mxu0 0.0
    %566 = vmatpush1.xpose.msra.mxu0 0.0
    %567 = vmatprep.subr.mxu0 0.0
    %568 = vmatpush1.xpose.msra.mxu0 0.0
    %569 = vmatprep.subr.mxu0 0.0
    %570 = vmatpush1.xpose.msra.mxu0 0.0
    %571 = vmatprep.subr.mxu0 0.0
    %572 = vmatpush1.xpose.msra.mxu0 0.0
    %573 = vmatprep.subr.mxu0 0.0
    %574 = vmatpush1.xpose.msra.mxu0 0.0
    %575 = vmatprep.subr.mxu0 0.0
    %576 = vmatpush1.xpose.msra.mxu0 0.0
    %577 = vmatprep.subr.mxu0 0.0
    %578 = vmatpush1.xpose.msra.mxu0 0.0
    %579 = vmatprep.subr.mxu0 0.0
    %580 = vmatpush1.xpose.msra.mxu0 0.0
    %581 = vmatprep.subr.mxu0 0.0
    %582 = vmatpush1.xpose.msra.mxu0 0.0
    %583 = vmatprep.subr.mxu0 0.0
    %584 = vmatpush1.xpose.msra.mxu0 0.0
    %585 = vmatprep.subr.mxu0 0.0
    %586 = vmatpush1.xpose.msra.mxu0 0.0
    %587 = vmatprep.subr.mxu0 0.0
    %588 = vmatpush1.xpose.msra.mxu0 0.0
    %589 = vmatprep.subr.mxu0 0.0
    %590 = vmatpush1.xpose.msra.mxu0 0.0
    %591 = vmatprep.subr.mxu0 0.0
    %592 = vmatpush1.xpose.msra.mxu0 0.0
    %593 = vmatprep.subr.mxu0 0.0
    %594 = vmatpush1.xpose.msra.mxu0 0.0
    %595 = vmatprep.subr.mxu0 0.0
    %596 = vmatpush1.xpose.msra.mxu0 0.0
    %597 = vmatprep.subr.mxu0 0.0
    %598 = vmatpush1.xpose.msra.mxu0 0.0
    %599 = vmatprep.subr.mxu0 0.0
    %600 = vmatpush1.xpose.msra.mxu0 0.0
    %601 = vmatprep.subr.mxu0 0.0
    %602 = vmatpush1.xpose.msra.mxu0 0.0
    %603 = vmatprep.mubr.f32.mxu0 0.0
    %604 = vmatmul.mubr.f32.gmra.mrb[0].mxu0 %v488
    %v605 = vpop.f32.mrb[0].mxu0
    %v606 = vadd.f32 0.0, %v605
    %v607 = vpop.f32.mrb[0].mxu0
    %608 = vdwg.mxu0
    %v609 = vlaneseq
    %v610 = vshrl.u32 %v609, 7
    %v611 = vsub.s32 0, %v610
    %v612 = vrot.slane %v606, %v611
    %v613 = vadd.f32 %v538, %v612
    %vm614 = vcmp.gt.f32.partialorder %v613, 0.0
    %v615 = vmul.f32 %v613, 0.2
    %v616 = vsel %vm614, %v613, %v615
    %vm617 = vcmp.gt.f32.partialorder %v446, 0.0
    %v618 = vsel %vm617, %v616, -1e+30
    %vm619 = vcmask 64512
    %v620 = vsel %vm619, %v618, -inf
    %621 = vmax.xlane.f32.xlu0 %v620
    %v622 = vpop.xlane.xlu0 %621
    %v623 = vsub.f32 %v618, %v622
    %v624 = vmul.f32 %v623, 1.442695
    %v625 = vpow.pop %v624
    %v626 = vsel %vm619, %v625, 0.0
    %627 = vadd.xlane.f32.xlu0 %v626
    %v628 = vpop.xlane.xlu0 %627
    %v629 = vrcp.pop %v628
    %v630 = vmul.f32 %v625, %v629
    %v631 = vpack.c.bf16 %v630, %v630
    %v632 = vpack.c.bf16 %v525, %v525
    %v634 = vsel %vm619, %v631, 0
    %vm636 = vcmask 1043456
    %v638 = vsel %vm636, %v632, 0
    %640 = vmatprep.subr.bf16.mxu0 0
    %641 = vmatpush1.bf16.msra.mxu0 %v638
    %642 = vmatprep.subr.bf16.mxu0 0
    %643 = vmatpush1.bf16.msra.mxu0 0
    %644 = vmatprep.subr.bf16.mxu0 0
    %645 = vmatpush1.bf16.msra.mxu0 0
    %646 = vmatprep.subr.bf16.mxu0 0
    %647 = vmatpush1.bf16.msra.mxu0 0
    %648 = vmatprep.subr.bf16.mxu0 0
    %649 = vmatpush1.bf16.msra.mxu0 0
    %650 = vmatprep.subr.bf16.mxu0 0
    %651 = vmatpush1.bf16.msra.mxu0 0
    %652 = vmatprep.subr.bf16.mxu0 0
    %653 = vmatpush1.bf16.msra.mxu0 0
    %654 = vmatprep.subr.bf16.mxu0 0
    %655 = vmatpush1.bf16.msra.mxu0 0
    %656 = vmatprep.subr.bf16.mxu0 0
    %657 = vmatpush1.bf16.msra.mxu0 0
    %658 = vmatprep.subr.bf16.mxu0 0
    %659 = vmatpush1.bf16.msra.mxu0 0
    %660 = vmatprep.subr.bf16.mxu0 0
    %661 = vmatpush1.bf16.msra.mxu0 0
    %662 = vmatprep.subr.bf16.mxu0 0
    %663 = vmatpush1.bf16.msra.mxu0 0
    %664 = vmatprep.subr.bf16.mxu0 0
    %665 = vmatpush1.bf16.msra.mxu0 0
    %666 = vmatprep.subr.bf16.mxu0 0
    %667 = vmatpush1.bf16.msra.mxu0 0
    %668 = vmatprep.subr.bf16.mxu0 0
    %669 = vmatpush1.bf16.msra.mxu0 0
    %670 = vmatprep.subr.bf16.mxu0 0
    %671 = vmatpush1.bf16.msra.mxu0 0
    %672 = vmatprep.mubr.bf16.mxu0 0
    %673 = vmatmul.mubr.bf16.gmra.mrb[0].mxu0 %v634
    %v674 = vpop.f32.mrb[0].mxu0
    %v675 = vadd.f32 0.0, %v674
    %v676 = vpop.f32.mrb[0].mxu0
    %v677 = vpop.f32.mrb[0].mxu0
    %v678 = vpop.f32.mrb[0].mxu0
    %679 = vdwg.mxu0
    %vm680 = vcmp.gt.f32.partialorder %v675, 0.0
    %v681 = vmin.f32 %v675, 0.0
    %v682 = vmul.f32 %v681, 1.442695
    %v683 = vpow.pop %v682
    %v684 = vsub.f32 %v683, 1.0
    %v685 = vsel %vm680, %v675, %v684
    %v686 = vpack.c.bf16 %v421, %v421
    %687 = vmatprep.subr.bf16.mxu0 0
    %688 = vmatpush1.bf16.msra.mxu0 %v479
    %689 = vmatprep.subr.bf16.mxu0 0
    %690 = vmatpush1.bf16.msra.mxu0 %v480
    %691 = vmatprep.subr.bf16.mxu0 0
    %692 = vmatpush1.bf16.msra.mxu0 %v481
    %693 = vmatprep.subr.bf16.mxu0 0
    %694 = vmatpush1.bf16.msra.mxu0 %v482
    %695 = vmatprep.subr.bf16.mxu0 0
    %696 = vmatpush1.bf16.msra.mxu0 %v483
    %697 = vmatprep.subr.bf16.mxu0 0
    %698 = vmatpush1.bf16.msra.mxu0 %v484
    %699 = vmatprep.subr.bf16.mxu0 0
    %700 = vmatpush1.bf16.msra.mxu0 %v485
    %701 = vmatprep.subr.bf16.mxu0 0
    %702 = vmatpush1.bf16.msra.mxu0 %v486
    %703 = vmatprep.subr.bf16.mxu0 0
    %704 = vmatpush1.bf16.msra.mxu0 0
    %705 = vmatprep.subr.bf16.mxu0 0
    %706 = vmatpush1.bf16.msra.mxu0 0
    %707 = vmatprep.subr.bf16.mxu0 0
    %708 = vmatpush1.bf16.msra.mxu0 0
    %709 = vmatprep.subr.bf16.mxu0 0
    %710 = vmatpush1.bf16.msra.mxu0 0
    %711 = vmatprep.subr.bf16.mxu0 0
    %712 = vmatpush1.bf16.msra.mxu0 0
    %713 = vmatprep.subr.bf16.mxu0 0
    %714 = vmatpush1.bf16.msra.mxu0 0
    %715 = vmatprep.subr.bf16.mxu0 0
    %716 = vmatpush1.bf16.msra.mxu0 0
    %717 = vmatprep.subr.bf16.mxu0 0
    %718 = vmatpush1.bf16.msra.mxu0 0
    %719 = vmatprep.mubr.bf16.mxu0 0
    %720 = vmatmul.mubr.bf16.gmra.mrb[0].mxu0 %v686
    %v721 = vpop.f32.mrb[0].mxu0
    %v722 = vadd.f32 0.0, %v721
    %v723 = vpop.f32.mrb[0].mxu0
    %v724 = vpop.f32.mrb[0].mxu0
    %v725 = vpop.f32.mrb[0].mxu0
    %726 = vdwg.mxu0
    %v727 = vmul.f32 %v722, %v534
    %728 = vadd.xlane.f32.xlu0 %v727
    %v729 = vpop.xlane.xlu0 %728
    %730 = vmatprep.subr.mxu0 0.0
    %731 = vmatpush1.xpose.msra.mxu0 %v722
    %732 = vmatprep.subr.mxu0 0.0
    %733 = vmatpush1.xpose.msra.mxu0 0.0
    %734 = vmatprep.subr.mxu0 0.0
    %735 = vmatpush1.xpose.msra.mxu0 0.0
    %736 = vmatprep.subr.mxu0 0.0
    %737 = vmatpush1.xpose.msra.mxu0 0.0
    %738 = vmatprep.subr.mxu0 0.0
    %739 = vmatpush1.xpose.msra.mxu0 0.0
    %740 = vmatprep.subr.mxu0 0.0
    %741 = vmatpush1.xpose.msra.mxu0 0.0
    %742 = vmatprep.subr.mxu0 0.0
    %743 = vmatpush1.xpose.msra.mxu0 0.0
    %744 = vmatprep.subr.mxu0 0.0
    %745 = vmatpush1.xpose.msra.mxu0 0.0
    %746 = vmatprep.subr.mxu0 0.0
    %747 = vmatpush1.xpose.msra.mxu0 0.0
    %748 = vmatprep.subr.mxu0 0.0
    %749 = vmatpush1.xpose.msra.mxu0 0.0
    %750 = vmatprep.subr.mxu0 0.0
    %751 = vmatpush1.xpose.msra.mxu0 0.0
    %752 = vmatprep.subr.mxu0 0.0
    %753 = vmatpush1.xpose.msra.mxu0 0.0
    %754 = vmatprep.subr.mxu0 0.0
    %755 = vmatpush1.xpose.msra.mxu0 0.0
    %756 = vmatprep.subr.mxu0 0.0
    %757 = vmatpush1.xpose.msra.mxu0 0.0
    %758 = vmatprep.subr.mxu0 0.0
    %759 = vmatpush1.xpose.msra.mxu0 0.0
    %760 = vmatprep.subr.mxu0 0.0
    %761 = vmatpush1.xpose.msra.mxu0 0.0
    %762 = vmatprep.subr.mxu0 0.0
    %763 = vmatpush1.xpose.msra.mxu0 0.0
    %764 = vmatprep.subr.mxu0 0.0
    %765 = vmatpush1.xpose.msra.mxu0 0.0
    %766 = vmatprep.subr.mxu0 0.0
    %767 = vmatpush1.xpose.msra.mxu0 0.0
    %768 = vmatprep.subr.mxu0 0.0
    %769 = vmatpush1.xpose.msra.mxu0 0.0
    %770 = vmatprep.subr.mxu0 0.0
    %771 = vmatpush1.xpose.msra.mxu0 0.0
    %772 = vmatprep.subr.mxu0 0.0
    %773 = vmatpush1.xpose.msra.mxu0 0.0
    %774 = vmatprep.subr.mxu0 0.0
    %775 = vmatpush1.xpose.msra.mxu0 0.0
    %776 = vmatprep.subr.mxu0 0.0
    %777 = vmatpush1.xpose.msra.mxu0 0.0
    %778 = vmatprep.subr.mxu0 0.0
    %779 = vmatpush1.xpose.msra.mxu0 0.0
    %780 = vmatprep.subr.mxu0 0.0
    %781 = vmatpush1.xpose.msra.mxu0 0.0
    %782 = vmatprep.subr.mxu0 0.0
    %783 = vmatpush1.xpose.msra.mxu0 0.0
    %784 = vmatprep.subr.mxu0 0.0
    %785 = vmatpush1.xpose.msra.mxu0 0.0
    %786 = vmatprep.subr.mxu0 0.0
    %787 = vmatpush1.xpose.msra.mxu0 0.0
    %788 = vmatprep.subr.mxu0 0.0
    %789 = vmatpush1.xpose.msra.mxu0 0.0
    %790 = vmatprep.subr.mxu0 0.0
    %791 = vmatpush1.xpose.msra.mxu0 0.0
    %792 = vmatprep.subr.mxu0 0.0
    %793 = vmatpush1.xpose.msra.mxu0 0.0
    %794 = vmatprep.mubr.f32.mxu0 0.0
    %795 = vmatmul.mubr.f32.gmra.mrb[0].mxu0 %v488
    %v796 = vpop.f32.mrb[0].mxu0
    %v797 = vadd.f32 0.0, %v796
    %v798 = vpop.f32.mrb[0].mxu0
    %799 = vdwg.mxu0
    %v800 = vlaneseq
    %v801 = vshrl.u32 %v800, 7
    %v802 = vsub.s32 0, %v801
    %v803 = vrot.slane %v797, %v802
    %v804 = vadd.f32 %v729, %v803
    %vm805 = vcmp.gt.f32.partialorder %v804, 0.0
    %v806 = vmul.f32 %v804, 0.2
    %v807 = vsel %vm805, %v804, %v806
    %vm808 = vcmp.gt.f32.partialorder %v462, 0.0
    %v809 = vsel %vm808, %v807, -1e+30
    %v810 = vsel %vm619, %v809, -inf
    %811 = vmax.xlane.f32.xlu0 %v810
    %v812 = vpop.xlane.xlu0 %811
    %v813 = vsub.f32 %v809, %v812
    %v814 = vmul.f32 %v813, 1.442695
    %v815 = vpow.pop %v814
    %v816 = vsel %vm619, %v815, 0.0
    %817 = vadd.xlane.f32.xlu0 %v816
    %v818 = vpop.xlane.xlu0 %817
    %v819 = vrcp.pop %v818
    %v820 = vmul.f32 %v815, %v819
    %v821 = vpack.c.bf16 %v820, %v820
    %v822 = vpack.c.bf16 %v722, %v722
    %v824 = vsel %vm619, %v821, 0
    %v827 = vsel %vm636, %v822, 0
    %829 = vmatprep.subr.bf16.mxu0 0
    %830 = vmatpush1.bf16.msra.mxu0 %v827
    %831 = vmatprep.subr.bf16.mxu0 0
    %832 = vmatpush1.bf16.msra.mxu0 0
    %833 = vmatprep.subr.bf16.mxu0 0
    %834 = vmatpush1.bf16.msra.mxu0 0
    %835 = vmatprep.subr.bf16.mxu0 0
    %836 = vmatpush1.bf16.msra.mxu0 0
    %837 = vmatprep.subr.bf16.mxu0 0
    %838 = vmatpush1.bf16.msra.mxu0 0
    %839 = vmatprep.subr.bf16.mxu0 0
    %840 = vmatpush1.bf16.msra.mxu0 0
    %841 = vmatprep.subr.bf16.mxu0 0
    %842 = vmatpush1.bf16.msra.mxu0 0
    %843 = vmatprep.subr.bf16.mxu0 0
    %844 = vmatpush1.bf16.msra.mxu0 0
    %845 = vmatprep.subr.bf16.mxu0 0
    %846 = vmatpush1.bf16.msra.mxu0 0
    %847 = vmatprep.subr.bf16.mxu0 0
    %848 = vmatpush1.bf16.msra.mxu0 0
    %849 = vmatprep.subr.bf16.mxu0 0
    %850 = vmatpush1.bf16.msra.mxu0 0
    %851 = vmatprep.subr.bf16.mxu0 0
    %852 = vmatpush1.bf16.msra.mxu0 0
    %853 = vmatprep.subr.bf16.mxu0 0
    %854 = vmatpush1.bf16.msra.mxu0 0
    %855 = vmatprep.subr.bf16.mxu0 0
    %856 = vmatpush1.bf16.msra.mxu0 0
    %857 = vmatprep.subr.bf16.mxu0 0
    %858 = vmatpush1.bf16.msra.mxu0 0
    %859 = vmatprep.subr.bf16.mxu0 0
    %860 = vmatpush1.bf16.msra.mxu0 0
    %861 = vmatprep.mubr.bf16.mxu0 0
    %862 = vmatmul.mubr.bf16.gmra.mrb[0].mxu0 %v824
    %v863 = vpop.f32.mrb[0].mxu0
    %v864 = vadd.f32 0.0, %v863
    %v865 = vpop.f32.mrb[0].mxu0
    %v866 = vpop.f32.mrb[0].mxu0
    %v867 = vpop.f32.mrb[0].mxu0
    %868 = vdwg.mxu0
    %vm869 = vcmp.gt.f32.partialorder %v864, 0.0
    %v870 = vmin.f32 %v864, 0.0
    %v871 = vmul.f32 %v870, 1.442695
    %v872 = vpow.pop %v871
    %v873 = vsub.f32 %v872, 1.0
    %v874 = vsel %vm869, %v864, %v873
    %v875 = vpack.c.bf16 %v685, %v685
    %v876 = vpack.c.bf16 %v874, %v874
    %877 = vmatprep.subr.bf16.mxu0 0
    %878 = vmatpush1.bf16.xpose.msra.mxu0 %v876
    %879 = vmatprep.subr.bf16.mxu0 0
    %880 = vmatpush1.bf16.xpose.msra.mxu0 0
    %881 = vmatprep.subr.bf16.mxu0 0
    %882 = vmatpush1.bf16.xpose.msra.mxu0 0
    %883 = vmatprep.subr.bf16.mxu0 0
    %884 = vmatpush1.bf16.xpose.msra.mxu0 0
    %885 = vmatprep.subr.bf16.mxu0 0
    %886 = vmatpush1.bf16.xpose.msra.mxu0 0
    %887 = vmatprep.subr.bf16.mxu0 0
    %888 = vmatpush1.bf16.xpose.msra.mxu0 0
    %889 = vmatprep.subr.bf16.mxu0 0
    %890 = vmatpush1.bf16.xpose.msra.mxu0 0
    %891 = vmatprep.subr.bf16.mxu0 0
    %892 = vmatpush1.bf16.xpose.msra.mxu0 0
    %893 = vmatprep.subr.bf16.mxu0 0
    %894 = vmatpush1.bf16.xpose.msra.mxu0 0
    %895 = vmatprep.subr.bf16.mxu0 0
    %896 = vmatpush1.bf16.xpose.msra.mxu0 0
    %897 = vmatprep.subr.bf16.mxu0 0
    %898 = vmatpush1.bf16.xpose.msra.mxu0 0
    %899 = vmatprep.subr.bf16.mxu0 0
    %900 = vmatpush1.bf16.xpose.msra.mxu0 0
    %901 = vmatprep.subr.bf16.mxu0 0
    %902 = vmatpush1.bf16.xpose.msra.mxu0 0
    %903 = vmatprep.subr.bf16.mxu0 0
    %904 = vmatpush1.bf16.xpose.msra.mxu0 0
    %905 = vmatprep.subr.bf16.mxu0 0
    %906 = vmatpush1.bf16.xpose.msra.mxu0 0
    %907 = vmatprep.subr.bf16.mxu0 0
    %908 = vmatpush1.bf16.xpose.msra.mxu0 0
    %909 = vmatprep.mubr.bf16.mxu0 0
    %910 = vmatmul.mubr.bf16.gmra.mrb[0].mxu0 %v875
    %v911 = vpop.f32.mrb[0].mxu0
    %v912 = vadd.f32 0.0, %v911
    %v913 = vpop.f32.mrb[0].mxu0
    %v914 = vpop.f32.mrb[0].mxu0
    %v915 = vpop.f32.mrb[0].mxu0
    %916 = vdwg.mxu0
    %v917 = vsel %vm619, %v912, -inf
    %918 = vmax.xlane.f32.xlu0 %v917
    %v919 = vpop.xlane.xlu0 %918
    %v920 = vsub.f32 %v912, %v919
    %v921 = vmul.f32 %v920, 1.442695
    %v922 = vpow.pop %v921
    %v923 = vsel %vm619, %v922, 0.0
    %924 = vadd.xlane.f32.xlu0 %v923
    %v925 = vpop.xlane.xlu0 %924
    %v926 = vlog2.pop %v925
    %v927 = vmul.f32 %v926, 0.6931472
    %v928 = vsub.f32 %v920, %v927
    %929 = vst.msk [vmem:[#allocation11] sm:$0xff] %vm619, %v928
    %v930 = vsel %vm619, %v928, -inf
    %v931 = vrot.slane %v930, 4
    %v932 = vmax.f32 %v930, %v931
    %v933 = vrot.slane %v932, 2
    %v934 = vmax.f32 %v932, %v933
    %v935 = vrot.slane %v934, 1
    %v936 = vmax.f32 %v934, %v935
    %vm937 = vcmp.ge.f32.partialorder %v928, %v936
    %v938 = vsel %vm937, %v442, 8
    %v939 = vsel %vm619, %v938, 2147483647
    %v940 = vrot.slane %v939, 4
    %vm941 = vcmp.lt.s32.totalorder %v939, %v940
    %v942 = vsel %vm941, %v939, %v940
    %v943 = vrot.slane %v942, 2
    %vm944 = vcmp.lt.s32.totalorder %v942, %v943
    %v945 = vsel %vm944, %v942, %v943
    %v946 = vrot.slane %v945, 1
    %vm947 = vcmp.lt.s32.totalorder %v945, %v946
    %v948 = vsel %vm947, %v945, %v946
    %vm949 = vcmask 57344
    %950 = vst.msk [vmem:[#allocation12] sm:$0x1] %vm949, %v948
    // Predicated region
    $region66: #{forward.1} parent=1 // pred_check
      _
    $region67: #{forward.1} parent=1 // pred_check_branch
      %952 = sbr.rel (0) target = $region69
    $region68: #{forward.1} parent=1 // pred_region
      %s954 = ssub.s32 128, 128
      %955 = vsyncadd [#allocation4], %s954
      %s957 = sshll.u32 [#allocation11], 4
      %s958 = int_to_ptr.vmem [resolvable:$true] %s957
      %960 = dma.vmem_to_hbm [thread:$0]  %s958, 128, %s11, [#allocation4]
    $region69: #{forward.1} parent=1 // pred_fallthru
      _
    // Predicated region
    $region70: #{forward.1} parent=1 // pred_check
      _
    $region71: #{forward.1} parent=1 // pred_check_branch
      %962 = sbr.rel (0) target = $region73
    $region72: #{forward.1} parent=1 // pred_region
      %s964 = ssub.s32 16, 16
      %965 = vsyncadd [#allocation13], %s964
      %s967 = sshll.u32 [#allocation12], 4
      %s968 = int_to_ptr.vmem [resolvable:$true] %s967
      %970 = dma.vmem_to_hbm [thread:$0]  %s968, 16, %s12, [#allocation13]
    $region73: #{forward.1} parent=1 // pred_fallthru
      _
    // Predicated region
    $region74: #{forward.1} parent=1 // pred_check
      _
    $region75: #{forward.1} parent=1 // pred_check_branch
      %972 = sbr.rel (0) target = $region77
    $region76: #{forward.1} parent=1 // pred_region
      %973 = dma.done [#allocation4], 128
    $region77: #{forward.1} parent=1 // pred_fallthru
      _
    // Predicated region
    $region78: #{forward.1} parent=1 // pred_check
      _
    $region79: #{forward.1} parent=1 // pred_check_branch
      %975 = sbr.rel (0) target = $region81
    $region80: #{forward.1} parent=1 // pred_region
      %976 = dma.done [#allocation13], 16
    $region81: #{forward.1} parent=1 // pred_fallthru
      _
    %977 = vsyncpa [#allocation3], 1
    %978 = vsyncpa [#allocation6], 1
    %979 = vsyncpa [#allocation9], 1
    %980 = vsyncpa [#allocation4], 1
    %981 = vsyncpa [#allocation13], 1

</llo_original>
